<compile_context>
chip_gen: v5e
topology: v5e:2x2
jax: 0.10.0
libtpu: 0.0.40
codegen_flags: <defaults>
</compile_context>

<pallas_src>
import functools

import jax
import jax.numpy as jnp
from jax import lax
from jax.experimental import pallas as pl
from jax.experimental.pallas import tpu as pltpu

LEAKY_SLOPE = 0.2
BN_EPS = 1e-5


# --------------------------------------------------------------------------- #
# helpers
# --------------------------------------------------------------------------- #
def _round_up(x, m):
    return (x + m - 1) // m * m


def _apply_act(y, act):
    if act is None:
        return y
    if act == "leaky":
        return jnp.where(y >= 0, y, LEAKY_SLOPE * y)
    if act == "relu":
        return jnp.maximum(y, 0)
    if act == "tanh":
        return jnp.tanh(y)
    raise ValueError(f"unknown activation {act}")


# --------------------------------------------------------------------------- #
# The Pallas kernel: tiled matmul + optional bias / tanh / BN partial stats
# --------------------------------------------------------------------------- #
def _mm_kernel(*refs, use_bias, post_act, with_stats):
    """A:(tm,tk) bf16 x W:(tk,tn) bf16 -> O:(tm,tn); f32 accumulate in VMEM.

    Optional inputs : bias (1,tn) f32.
    Optional outputs: per-M-tile channel sum / sum-of-squares (1,1,tn) f32
                      (two-pass BatchNorm partial statistics).
    """
    if use_bias:
        a_ref, w_ref, b_ref = refs[:3]
        rest = refs[3:]
    else:
        a_ref, w_ref = refs[:2]
        rest = refs[2:]
    if with_stats:
        o_ref, sum_ref, sq_ref, acc_ref = rest
    else:
        o_ref, acc_ref = rest

    k = pl.program_id(2)

    @pl.when(k == 0)
    def _():
        acc_ref[...] = jnp.zeros_like(acc_ref)

    acc_ref[...] += jnp.dot(a_ref[...], w_ref[...],
                            preferred_element_type=jnp.float32)

    @pl.when(k == pl.num_programs(2) - 1)
    def _():
        y = acc_ref[...]
        if use_bias:
            y = y + b_ref[...]
        y = _apply_act(y, post_act)
        o_ref[...] = y.astype(o_ref.dtype)
        if with_stats:
            # zero-padded A rows / W columns contribute exact zeros here
            sum_ref[...] = jnp.sum(y, axis=0, keepdims=True)[None]
            sq_ref[...] = jnp.sum(y * y, axis=0, keepdims=True)[None]


def _matmul(a, w, bias=None, *, post_act=None, with_stats=False,
            out_dtype=jnp.bfloat16):
    """Pallas tiled matmul. a:(M,K), w:(K,N).  Returns (y_padded, s1, s2)."""
    M, K = a.shape
    _, Ncols = w.shape

    # lane-dense tiles; double-buffered footprint stays ~<=10 MiB (v7x safe).
    tm = min(1024, _round_up(M, 8))
    tk = min(512, _round_up(K, 128))
    tn = min(512, _round_up(Ncols, 128))
    Mp, Kp, Np = _round_up(M, tm), _round_up(K, tk), _round_up(Ncols, tn)
    gm, gn, gk = Mp // tm, Np // tn, Kp // tk

    a_p = jnp.pad(a.astype(jnp.bfloat16), ((0, Mp - M), (0, Kp - K)))
    w_p = jnp.pad(w.astype(jnp.bfloat16), ((0, Kp - K), (0, Np - Ncols)))

    in_arrays = [a_p, w_p]
    in_specs = [pl.BlockSpec((tm, tk), lambda i, j, k: (i, k)),
                pl.BlockSpec((tk, tn), lambda i, j, k: (k, j))]
    use_bias = bias is not None
    if use_bias:
        b_p = jnp.pad(bias.astype(jnp.float32).reshape(1, -1),
                      ((0, 0), (0, Np - Ncols)))
        in_arrays.append(b_p)
        in_specs.append(pl.BlockSpec((1, tn), lambda i, j, k: (0, j)))

    out_shape = [jax.ShapeDtypeStruct((Mp, Np), out_dtype)]
    out_specs = [pl.BlockSpec((tm, tn), lambda i, j, k: (i, j))]
    if with_stats:
        out_shape += [jax.ShapeDtypeStruct((gm, 1, Np), jnp.float32)] * 2
        out_specs += [pl.BlockSpec((1, 1, tn), lambda i, j, k: (i, 0, j))] * 2

    # CostEstimate including A re-fetch (gn) and W re-fetch (gm) factors.
    bytes_accessed = (int(a_p.size) * 2 * gn + int(w_p.size) * 2 * gm
                      + Mp * Np * jnp.dtype(out_dtype).itemsize)
    if use_bias:
        bytes_accessed += Np * 4 * gm * gn
    if with_stats:
        bytes_accessed += 2 * gm * Np * 4
    cost = pl.CostEstimate(
        flops=2 * Mp * Kp * Np,
        transcendentals=Mp * Np if post_act == "tanh" else 0,
        bytes_accessed=int(bytes_accessed))

    kernel = functools.partial(_mm_kernel, use_bias=use_bias,
                               post_act=post_act, with_stats=with_stats)

    res = pl.pallas_call(
        kernel,
        out_shape=tuple(out_shape),
        grid_spec=pltpu.PrefetchScalarGridSpec(
            num_scalar_prefetch=0,
            grid=(gm, gn, gk),
            in_specs=in_specs,
            out_specs=tuple(out_specs),
            scratch_shapes=[pltpu.VMEM((tm, tn), jnp.float32)],
        ),
        compiler_params=pltpu.CompilerParams(
            dimension_semantics=("parallel", "parallel", "arbitrary"),
            vmem_limit_bytes=48 * 1024 * 1024,
        ),
        cost_estimate=cost,
    )(*in_arrays)

    if with_stats:
        return res[0], res[1], res[2]
    return res[0], None, None


# --------------------------------------------------------------------------- #
# host-side glue: fused (affine + activation + concat) input and patch build
# --------------------------------------------------------------------------- #
def _fused_input(segments, pre_act):
    """segments: list of (tensor_nhwc, scale|None, shift|None).

    Applies the deferred BatchNorm affine and the pre-activation of the
    nn.Sequential, concatenates the skip segments channel-wise and casts to
    bf16.  XLA fuses all of this into the patch-extraction pass that follows.
    """
    parts = []
    for t, scale, shift in segments:
        y = t.astype(jnp.float32)
        if scale is not None:
            y = y * scale + shift
        y = _apply_act(y, pre_act)
        parts.append(y.astype(jnp.bfloat16))
    return parts[0] if len(parts) == 1 else jnp.concatenate(parts, axis=-1)


def _im2col_s1(x, kh, kw):
    """Stride-1 VALID patches. (N,H,W,C) -> (N*OH*OW, kh*kw*C), taps row-major,
    channels fastest."""
    N, H, W, C = x.shape
    OH, OW = H - kh + 1, W - kw + 1
    cols = [x[:, i:i + OH, j:j + OW, :] for i in range(kh) for j in range(kw)]
    patches = jnp.stack(cols, axis=3)           # (N, OH, OW, kh*kw, C)
    return patches.reshape(N * OH * OW, kh * kw * C), (N, OH, OW)


def _bn_scale_shift(s1, s2, count, gamma, beta, n_cols, phases=1):
    """Combine per-tile partial sums into a per-channel scale/shift."""
    # TODO(synk): E[x^2] - E[x]^2 in f32 can cancel for large-mean activations;
    # a Welford / shifted combine would be more robust.
    s1 = jnp.sum(s1, axis=(0, 1))[:n_cols]
    s2 = jnp.sum(s2, axis=(0, 1))[:n_cols]
    if phases > 1:                               # fold deconv phases -> channel
        s1 = s1.reshape(phases, -1).sum(axis=0)
        s2 = s2.reshape(phases, -1).sum(axis=0)
    mean = s1 / count
    var = jnp.maximum(s2 / count - mean * mean, 0.0)
    inv = lax.rsqrt(var + BN_EPS)
    scale = gamma.astype(jnp.float32) * inv
    shift = beta.astype(jnp.float32) - mean * scale
    return scale, shift


def _down_conv(segments, weight_oihw, *, pre_act=None, bn=None):
    """Conv2d(k=4, s=2, p=1, bias=False) as pad + space-to-depth + 2x2/s1 conv."""
    x = _fused_input(segments, pre_act)          # (N,H,W,Cin) bf16
    N, H, W, Cin = x.shape
    Cout = weight_oihw.shape[0]
    assert H % 2 == 0 and W % 2 == 0

    P = jnp.pad(x, ((0, 0), (1, 1), (1, 1), (0, 0)))
    A_, B_ = (H + 2) // 2, (W + 2) // 2
    # space-to-depth: channel order (dy, dx, ci), ci fastest
    S = P.reshape(N, A_, 2, B_, 2, Cin).transpose(0, 1, 3, 2, 4, 5)
    S = S.reshape(N, A_, B_, 4 * Cin)

    a, (_, OH, OW) = _im2col_s1(S, 2, 2)         # M = N*(H/2)*(W/2), K = 16*Cin
    M = N * OH * OW

    # W[(ta,tb,dy,dx,ci), co] = w[co, ci, 2ta+dy, 2tb+dx]
    w = weight_oihw.reshape(Cout, Cin, 2, 2, 2, 2)        # (co,ci,ta,dy,tb,dx)
    w = jnp.transpose(w, (2, 4, 3, 5, 1, 0)).reshape(16 * Cin, Cout)

    y, s1, s2 = _matmul(a, w, None, with_stats=bn is not None)
    y = y[:M, :Cout].reshape(N, OH, OW, Cout)
    if bn is None:
        return y, None, None
    scale, shift = _bn_scale_shift(s1, s2, M, bn[0], bn[1], Cout)
    return y, scale, shift


def _up_conv(segments, weight_iohw, bias=None, *, pre_act=None, post_act=None,
             bn=None, out_dtype=jnp.bfloat16):
    """ConvTranspose2d(k=4, s=2, p=1) as its sub-pixel equivalent:
    3x3 stride-1 conv with 4*Cout phase channels + pixel shuffle (no
    zero-inserted input, exact)."""
    x = _fused_input(segments, pre_act)          # (N,H,W,Cin) bf16
    N, H, W, Cin = x.shape
    Cout = weight_iohw.shape[1]

    P = jnp.pad(x, ((0, 0), (1, 1), (1, 1), (0, 0)))
    a, (_, OH, OW) = _im2col_s1(P, 3, 3)         # OH=H, OW=W; K = 9*Cin
    M = N * OH * OW

    # equivalent 3x3 weight; columns ordered (phase_r, phase_c, co), co fastest.
    # For output phase r: window row wy uses deconv kernel row ky via
    #   r=0: (wy=0,ky=3), (wy=1,ky=1)    r=1: (wy=1,ky=2), (wy=2,ky=0)
    taps = ((0, 0, 3), (0, 1, 1), (1, 1, 2), (1, 2, 0))   # (phase, win, kidx)
    w3 = jnp.zeros((3, 3, Cin, 2, 2, Cout), jnp.float32)
    for r, wy, ky in taps:
        for c, wx, kx in taps:
            w3 = w3.at[wy, wx, :, r, c, :].set(
                weight_iohw[:, :, ky, kx].astype(jnp.float32))
    w = w3.reshape(9 * Cin, 4 * Cout)
    b4 = None if bias is None else jnp.tile(bias.astype(jnp.float32), 4)

    y, s1, s2 = _matmul(a, w, b4, post_act=post_act,
                        with_stats=bn is not None, out_dtype=out_dtype)

    # pixel shuffle: (M, 4*Cout) -> (N, 2H, 2W, Cout)
    y = y[:M, :4 * Cout].reshape(N, OH, OW, 2, 2, Cout)
    y = jnp.transpose(y, (0, 1, 3, 2, 4, 5)).reshape(N, 2 * OH, 2 * OW, Cout)

    if bn is None:
        return y, None, None
    scale, shift = _bn_scale_shift(s1, s2, 4 * M, bn[0], bn[1], 4 * Cout,
                                   phases=4)
    return y, scale, shift


# --------------------------------------------------------------------------- #
# UnetSkipConnectionBlock: params + forward
# --------------------------------------------------------------------------- #
def init_unet_block_params(key, outer_nc, inner_nc, input_nc=None, submodule=None,
                           outermost=False, innermost=False):
    """norm_layer = BatchNorm2d  =>  use_bias=False for normed convs."""
    if input_nc is None:
        input_nc = outer_nc
    k = jax.random.split(key, 2)
    p = dict(outermost=outermost, innermost=innermost, submodule=submodule)
    p["down_w"] = 0.02 * jax.random.normal(k[0], (inner_nc, input_nc, 4, 4), jnp.float32)
    if outermost:
        p["up_w"] = 0.02 * jax.random.normal(k[1], (inner_nc * 2, outer_nc, 4, 4), jnp.float32)
        p["up_b"] = jnp.zeros((outer_nc,), jnp.float32)   # ConvTranspose2d default bias
    elif innermost:
        p["up_w"] = 0.02 * jax.random.normal(k[1], (inner_nc, outer_nc, 4, 4), jnp.float32)
        p["up_gamma"] = jnp.ones((outer_nc,), jnp.float32)
        p["up_beta"] = jnp.zeros((outer_nc,), jnp.float32)
    else:
        p["down_gamma"] = jnp.ones((inner_nc,), jnp.float32)
        p["down_beta"] = jnp.zeros((inner_nc,), jnp.float32)
        p["up_w"] = 0.02 * jax.random.normal(k[1], (inner_nc * 2, outer_nc, 4, 4), jnp.float32)
        p["up_gamma"] = jnp.ones((outer_nc,), jnp.float32)
        p["up_beta"] = jnp.zeros((outer_nc,), jnp.float32)
    return p


def _unet_block_segments(p, segments):
    """Forward of UnetSkipConnectionBlock over "deferred" segments.

    A segment is (raw tensor NHWC, deferred BN scale|None, deferred BN
    shift|None); the consumer conv applies the affine + pre-activation while
    building its patches, so normalized tensors are never materialized.
    Segment concatenation == torch.cat([x, model(x)], dim=1).
    """
    if p["outermost"]:
        # down = [downconv]; up = [relu, upconv(+bias), tanh]; no skip concat
        d, _, _ = _down_conv(segments, p["down_w"])
        mid = _unet_block_segments(p["submodule"], [(d, None, None)])
        out, _, _ = _up_conv(mid, p["up_w"], p["up_b"], pre_act="relu",
                             post_act="tanh", out_dtype=jnp.float32)
        return [(out, None, None)]
    if p["innermost"]:
        # down = [leakyrelu, downconv]; up = [relu, upconv, BN]; cat([x, out])
        d, _, _ = _down_conv(segments, p["down_w"], pre_act="leaky")
        u, su, bu = _up_conv([(d, None, None)], p["up_w"], pre_act="relu",
                             bn=(p["up_gamma"], p["up_beta"]))
        return segments + [(u, su, bu)]
    # middle: down = [leakyrelu, downconv, BN]; up = [relu, upconv, BN]; cat
    d, sd, bd = _down_conv(segments, p["down_w"], pre_act="leaky",
                           bn=(p["down_gamma"], p["down_beta"]))
    inner_segs = [(d, sd, bd)]
    if p["submodule"] is not None:
        inner_segs = _unet_block_segments(p["submodule"], inner_segs)
    u, su, bu = _up_conv(inner_segs, p["up_w"], pre_act="relu",
                         bn=(p["up_gamma"], p["up_beta"]))
    # TODO(synk): nn.Dropout(0.5) path (use_dropout=True) not implemented.
    return segments + [(u, su, bu)]


def unet_forward(params, x_nchw):
    x = jnp.transpose(x_nchw, (0, 2, 3, 1)).astype(jnp.float32)   # NCHW -> NHWC
    segs = _unet_block_segments(params, [(x, None, None)])
    outs = []
    for t, scale, shift in segs:                # materialize only at the top
        y = t.astype(jnp.float32)
        if scale is not None:
            y = y * scale + shift
        outs.append(y)
    y = outs[0] if len(outs) == 1 else jnp.concatenate(outs, axis=-1)
    return jnp.transpose(y, (0, 3, 1, 2))       # NHWC -> NCHW


# --------------------------------------------------------------------------- #
# pure-JAX f32 reference (for a sanity check against the Pallas path)
# --------------------------------------------------------------------------- #
def _ref_conv(x, w_oihw, stride, pad):
    return lax.conv_general_dilated(
        x, jnp.transpose(w_oihw, (2, 3, 1, 0)), (stride, stride),
        [(pad, pad), (pad, pad)], dimension_numbers=("NHWC", "HWIO", "NHWC"))


def _ref_deconv(x, w_iohw, b):
    w = jnp.transpose(jnp.flip(w_iohw, axis=(2, 3)), (2, 3, 0, 1))
    y = lax.conv_general_dilated(
        x, w, (1, 1), [(2, 2), (2, 2)], lhs_dilation=(2, 2),
        dimension_numbers=("NHWC", "HWIO", "NHWC"))
    return y if b is None else y + b


def _ref_bn(x, gamma, beta):
    m = jnp.mean(x, axis=(0, 1, 2))
    v = jnp.var(x, axis=(0, 1, 2))
    return (x - m) * lax.rsqrt(v + BN_EPS) * gamma + beta


def _ref_block(p, x):
    lrelu = lambda t: jnp.where(t >= 0, t, LEAKY_SLOPE * t)
    relu = lambda t: jnp.maximum(t, 0)
    if p["outermost"]:
        h = _ref_conv(x, p["down_w"], 2, 1)
        h = _ref_block(p["submodule"], h)
        return jnp.tanh(_ref_deconv(relu(h), p["up_w"], p["up_b"]))
    if p["innermost"]:
        h = _ref_conv(lrelu(x), p["down_w"], 2, 1)
        u = _ref_bn(_ref_deconv(relu(h), p["up_w"], None), p["up_gamma"], p["up_beta"])
        return jnp.concatenate([x, u], axis=-1)
    h = _ref_bn(_ref_conv(lrelu(x), p["down_w"], 2, 1), p["down_gamma"], p["down_beta"])
    if p["submodule"] is not None:
        h = _ref_block(p["submodule"], h)
    u = _ref_bn(_ref_deconv(relu(h), p["up_w"], None), p["up_gamma"], p["up_beta"])
    return jnp.concatenate([x, u], axis=-1)


def unet_reference(params, x_nchw):
    x = jnp.transpose(x_nchw, (0, 2, 3, 1)).astype(jnp.float32)
    return jnp.transpose(_ref_block(params, x), (0, 3, 1, 2))


# --------------------------------------------------------------------------- #
if __name__ == "__main__":
    key = jax.random.PRNGKey(0)
    k_inner, k_mid, k_outer, k_x = jax.random.split(key, 4)

    # 3-level U-Net: outermost( middle( innermost ) ), exercising all variants.
    inner = init_unet_block_params(k_inner, outer_nc=16, inner_nc=16, innermost=True)
    middle = init_unet_block_params(k_mid, outer_nc=8, inner_nc=16, submodule=inner)
    outer = init_unet_block_params(k_outer, outer_nc=4, inner_nc=8, input_nc=4,
                                   submodule=middle, outermost=True)

    # x: (N=2, C=4, H=16, W=16) -> down 8 -> 4 -> 2 -> up 4 -> 8 -> 16
    x = jax.random.normal(k_x, (2, 4, 16, 16), jnp.float32)

    fwd = jax.jit(lambda xx: unet_forward(outer, xx))
    out = jax.block_until_ready(fwd(x))

    assert out.shape == (2, 4, 16, 16), out.shape
    assert bool(jnp.all(jnp.isfinite(out)))
    assert bool(jnp.all(jnp.abs(out) <= 1.0 + 1e-5))  # outermost ends with tanh

    # cross-check against the f32 XLA reference (bf16 MXU path => loose tol)
    ref = jax.block_until_ready(jax.jit(lambda xx: unet_reference(outer, xx))(x))
    max_err = float(jnp.max(jnp.abs(out - ref)))
    assert max_err < 0.06, f"max abs error vs reference: {max_err}"

    print("KERNEL_OK")
</pallas_src>

<mosaic_0001>
module attributes {stable_mosaic.version = 11 : i64} {
  func.func @_mm_kernel(%arg0: i32, %arg1: i32, %arg2: i32, %arg3: memref<128x128xbf16, #tpu.memory_space<vmem>>, %arg4: memref<128x128xbf16, #tpu.memory_space<vmem>>, %arg5: memref<128x128xbf16, #tpu.memory_space<vmem>>, %arg6: memref<128x128xf32, #tpu.memory_space<vmem>>) attributes {dimension_semantics = [#tpu.dimension_semantics<parallel>, #tpu.dimension_semantics<parallel>, #tpu.dimension_semantics<arbitrary>], iteration_bounds = array<i64: 1, 1, 1>, scalar_prefetch = 0 : i64, scratch_operands = 1 : i64, tpu.core_type = #tpu.core_type<tc>, window_params = [{transform_indices = @transform_0, window_bounds = array<i64: 128, 128>}, {transform_indices = @transform_1, window_bounds = array<i64: 128, 128>}, {transform_indices = @transform_2, window_bounds = array<i64: 128, 128>}]} {
    %c0_i32 = arith.constant 0 : i32
    %0 = arith.cmpi eq, %arg2, %c0_i32 : i32
    %1 = arith.extui %0 : i1 to i32
    %c0_i32_0 = arith.constant 0 : i32
    %2 = arith.cmpi ne, %1, %c0_i32_0 : i32
    scf.if %2 {
      %cst_10 = arith.constant 0.000000e+00 : f32
      %12 = vector.broadcast %cst_10 : f32 to vector<128x128xf32>
      %c0_11 = arith.constant 0 : index
      %c0_12 = arith.constant 0 : index
      %13 = vector.load %arg6[%c0_11, %c0_12] : memref<128x128xf32, #tpu.memory_space<vmem>>, vector<128x128xf32>
      tpu.vector_store %arg6[%c0_11, %c0_12], %12 {strides = array<i32>} : memref<128x128xf32, #tpu.memory_space<vmem>>, vector<128x128xf32>,
    } else {
    }
    %c0 = arith.constant 0 : index
    %c0_1 = arith.constant 0 : index
    %3 = vector.load %arg6[%c0, %c0_1] : memref<128x128xf32, #tpu.memory_space<vmem>>, vector<128x128xf32>
    %c0_2 = arith.constant 0 : index
    %c0_3 = arith.constant 0 : index
    %4 = vector.load %arg3[%c0_2, %c0_3] : memref<128x128xbf16, #tpu.memory_space<vmem>>, vector<128x128xbf16>
    %c0_4 = arith.constant 0 : index
    %c0_5 = arith.constant 0 : index
    %5 = vector.load %arg4[%c0_4, %c0_5] : memref<128x128xbf16, #tpu.memory_space<vmem>>, vector<128x128xbf16>
    %cst = arith.constant dense<0.000000e+00> : vector<128x128xf32>
    %6 = tpu.matmul %4, %5, %cst {dimension_numbers = #tpu.dot_dimension_numbers<[1], [0], [0], [1], [0, 0, 1, 1], [], []>} : vector<128x128xbf16>, vector<128x128xbf16>, vector<128x128xf32> -> vector<128x128xf32>
    %7 = arith.addf %3, %6 : vector<128x128xf32>
    %c0_6 = arith.constant 0 : index
    %c0_7 = arith.constant 0 : index
    %8 = vector.load %arg6[%c0_6, %c0_7] : memref<128x128xf32, #tpu.memory_space<vmem>>, vector<128x128xf32>
    tpu.vector_store %arg6[%c0_6, %c0_7], %7 {strides = array<i32>} : memref<128x128xf32, #tpu.memory_space<vmem>>, vector<128x128xf32>,
    %c0_i32_8 = arith.constant 0 : i32
    %9 = arith.cmpi eq, %arg2, %c0_i32_8 : i32
    %10 = arith.extui %9 : i1 to i32
    %c0_i32_9 = arith.constant 0 : i32
    %11 = arith.cmpi ne, %10, %c0_i32_9 : i32
    scf.if %11 {
      %c0_10 = arith.constant 0 : index
      %c0_11 = arith.constant 0 : index
      %12 = vector.load %arg6[%c0_10, %c0_11] : memref<128x128xf32, #tpu.memory_space<vmem>>, vector<128x128xf32>
      %13 = arith.truncf %12 : vector<128x128xf32> to vector<128x128xbf16>
      %c0_12 = arith.constant 0 : index
      %c0_13 = arith.constant 0 : index
      %14 = vector.load %arg5[%c0_12, %c0_13] : memref<128x128xbf16, #tpu.memory_space<vmem>>, vector<128x128xbf16>
      tpu.vector_store %arg5[%c0_12, %c0_13], %13 {strides = array<i32>} : memref<128x128xbf16, #tpu.memory_space<vmem>>, vector<128x128xbf16>,
    } else {
    }
    return
  }
  func.func @transform_0(%arg0: i32, %arg1: i32, %arg2: i32) -> (i32, i32) {
    %c0_i32 = arith.constant 0 : i32
    return %arg0, %arg2 : i32, i32
  }
  func.func @transform_1(%arg0: i32, %arg1: i32, %arg2: i32) -> (i32, i32) {
    %c0_i32 = arith.constant 0 : i32
    return %arg2, %arg1 : i32, i32
  }
  func.func @transform_2(%arg0: i32, %arg1: i32, %arg2: i32) -> (i32, i32) {
    %c0_i32 = arith.constant 0 : i32
    return %arg0, %arg1 : i32, i32
  }
}

module attributes {stable_mosaic.version = 11 : i64} {
  func.func @_mm_kernel(%arg0: i32, %arg1: i32, %arg2: i32, %arg3: memref<32x128xbf16, #tpu.memory_space<vmem>>, %arg4: memref<128x128xbf16, #tpu.memory_space<vmem>>, %arg5: memref<32x128xbf16, #tpu.memory_space<vmem>>, %arg6: memref<1x1x128xf32, #tpu.memory_space<vmem>>, %arg7: memref<1x1x128xf32, #tpu.memory_space<vmem>>, %arg8: memref<32x128xf32, #tpu.memory_space<vmem>>) attributes {dimension_semantics = [#tpu.dimension_semantics<parallel>, #tpu.dimension_semantics<parallel>, #tpu.dimension_semantics<arbitrary>], iteration_bounds = array<i64: 1, 1, 1>, scalar_prefetch = 0 : i64, scratch_operands = 1 : i64, tpu.core_type = #tpu.core_type<tc>, window_params = [{transform_indices = @transform_0, window_bounds = array<i64: 32, 128>}, {transform_indices = @transform_1, window_bounds = array<i64: 128, 128>}, {transform_indices = @transform_2, window_bounds = array<i64: 32, 128>}, {transform_indices = @transform_3, window_bounds = array<i64: 1, 1, 128>}, {transform_indices = @transform_4, window_bounds = array<i64: 1, 1, 128>}]} {
    %c0_i32 = arith.constant 0 : i32
    %0 = arith.cmpi eq, %arg2, %c0_i32 : i32
    %1 = arith.extui %0 : i1 to i32
    %c0_i32_0 = arith.constant 0 : i32
    %2 = arith.cmpi ne, %1, %c0_i32_0 : i32
    scf.if %2 {
      %cst_10 = arith.constant 0.000000e+00 : f32
      %12 = vector.broadcast %cst_10 : f32 to vector<32x128xf32>
      %c0_11 = arith.constant 0 : index
      %c0_12 = arith.constant 0 : index
      %13 = vector.load %arg8[%c0_11, %c0_12] : memref<32x128xf32, #tpu.memory_space<vmem>>, vector<32x128xf32>
      tpu.vector_store %arg8[%c0_11, %c0_12], %12 {strides = array<i32>} : memref<32x128xf32, #tpu.memory_space<vmem>>, vector<32x128xf32>,
    } else {
    }
    %c0 = arith.constant 0 : index
    %c0_1 = arith.constant 0 : index
    %3 = vector.load %arg8[%c0, %c0_1] : memref<32x128xf32, #tpu.memory_space<vmem>>, vector<32x128xf32>
    %c0_2 = arith.constant 0 : index
    %c0_3 = arith.constant 0 : index
    %4 = vector.load %arg3[%c0_2, %c0_3] : memref<32x128xbf16, #tpu.memory_space<vmem>>, vector<32x128xbf16>
    %c0_4 = arith.constant 0 : index
    %c0_5 = arith.constant 0 : index
    %5 = vector.load %arg4[%c0_4, %c0_5] : memref<128x128xbf16, #tpu.memory_space<vmem>>, vector<128x128xbf16>
    %cst = arith.constant dense<0.000000e+00> : vector<32x128xf32>
    %6 = tpu.matmul %4, %5, %cst {dimension_numbers = #tpu.dot_dimension_numbers<[1], [0], [0], [1], [0, 0, 1, 1], [], []>} : vector<32x128xbf16>, vector<128x128xbf16>, vector<32x128xf32> -> vector<32x128xf32>
    %7 = arith.addf %3, %6 : vector<32x128xf32>
    %c0_6 = arith.constant 0 : index
    %c0_7 = arith.constant 0 : index
    %8 = vector.load %arg8[%c0_6, %c0_7] : memref<32x128xf32, #tpu.memory_space<vmem>>, vector<32x128xf32>
    tpu.vector_store %arg8[%c0_6, %c0_7], %7 {strides = array<i32>} : memref<32x128xf32, #tpu.memory_space<vmem>>, vector<32x128xf32>,
    %c0_i32_8 = arith.constant 0 : i32
    %9 = arith.cmpi eq, %arg2, %c0_i32_8 : i32
    %10 = arith.extui %9 : i1 to i32
    %c0_i32_9 = arith.constant 0 : i32
    %11 = arith.cmpi ne, %10, %c0_i32_9 : i32
    scf.if %11 {
      %c0_10 = arith.constant 0 : index
      %c0_11 = arith.constant 0 : index
      %12 = vector.load %arg8[%c0_10, %c0_11] : memref<32x128xf32, #tpu.memory_space<vmem>>, vector<32x128xf32>
      %13 = arith.truncf %12 : vector<32x128xf32> to vector<32x128xbf16>
      %c0_12 = arith.constant 0 : index
      %c0_13 = arith.constant 0 : index
      %14 = vector.load %arg5[%c0_12, %c0_13] : memref<32x128xbf16, #tpu.memory_space<vmem>>, vector<32x128xbf16>
      tpu.vector_store %arg5[%c0_12, %c0_13], %13 {strides = array<i32>} : memref<32x128xbf16, #tpu.memory_space<vmem>>, vector<32x128xbf16>,
      %cst_14 = arith.constant dense<0.000000e+00> : vector<128xf32>
      %15 = vector.multi_reduction <add>, %12, %cst_14 [0] : vector<32x128xf32> to vector<128xf32>
      %16 = vector.shape_cast %15 : vector<128xf32> to vector<1x128xf32>
      %17 = vector.shape_cast %16 : vector<1x128xf32> to vector<1x1x128xf32>
      %c0_15 = arith.constant 0 : index
      %c0_16 = arith.constant 0 : index
      %c0_17 = arith.constant 0 : index
      %18 = vector.load %arg6[%c0_15, %c0_16, %c0_17] : memref<1x1x128xf32, #tpu.memory_space<vmem>>, vector<1x1x128xf32>
      tpu.vector_store %arg6[%c0_15, %c0_16, %c0_17], %17 {strides = array<i32>} : memref<1x1x128xf32, #tpu.memory_space<vmem>>, vector<1x1x128xf32>,
      %19 = arith.mulf %12, %12 : vector<32x128xf32>
      %cst_18 = arith.constant dense<0.000000e+00> : vector<128xf32>
      %20 = vector.multi_reduction <add>, %19, %cst_18 [0] : vector<32x128xf32> to vector<128xf32>
      %21 = vector.shape_cast %20 : vector<128xf32> to vector<1x128xf32>
      %22 = vector.shape_cast %21 : vector<1x128xf32> to vector<1x1x128xf32>
      %c0_19 = arith.constant 0 : index
      %c0_20 = arith.constant 0 : index
      %c0_21 = arith.constant 0 : index
      %23 = vector.load %arg7[%c0_19, %c0_20, %c0_21] : memref<1x1x128xf32, #tpu.memory_space<vmem>>, vector<1x1x128xf32>
      tpu.vector_store %arg7[%c0_19, %c0_20, %c0_21], %22 {strides = array<i32>} : memref<1x1x128xf32, #tpu.memory_space<vmem>>, vector<1x1x128xf32>,
    } else {
    }
    return
  }
  func.func @transform_0(%arg0: i32, %arg1: i32, %arg2: i32) -> (i32, i32) {
    %c0_i32 = arith.constant 0 : i32
    return %arg0, %arg2 : i32, i32
  }
  func.func @transform_1(%arg0: i32, %arg1: i32, %arg2: i32) -> (i32, i32) {
    %c0_i32 = arith.constant 0 : i32
    return %arg2, %arg1 : i32, i32
  }
  func.func @transform_2(%arg0: i32, %arg1: i32, %arg2: i32) -> (i32, i32) {
    %c0_i32 = arith.constant 0 : i32
    return %arg0, %arg1 : i32, i32
  }
  func.func @transform_3(%arg0: i32, %arg1: i32, %arg2: i32) -> (i32, i32, i32) {
    %c0_i32 = arith.constant 0 : i32
    %c0_i32_0 = arith.constant 0 : i32
    return %arg0, %c0_i32, %arg1 : i32, i32, i32
  }
  func.func @transform_4(%arg0: i32, %arg1: i32, %arg2: i32) -> (i32, i32, i32) {
    %c0_i32 = arith.constant 0 : i32
    %c0_i32_0 = arith.constant 0 : i32
    return %arg0, %c0_i32, %arg1 : i32, i32, i32
  }
}

module attributes {stable_mosaic.version = 11 : i64} {
  func.func @_mm_kernel(%arg0: i32, %arg1: i32, %arg2: i32, %arg3: memref<8x256xbf16, #tpu.memory_space<vmem>>, %arg4: memref<256x128xbf16, #tpu.memory_space<vmem>>, %arg5: memref<8x128xbf16, #tpu.memory_space<vmem>>, %arg6: memref<8x128xf32, #tpu.memory_space<vmem>>) attributes {dimension_semantics = [#tpu.dimension_semantics<parallel>, #tpu.dimension_semantics<parallel>, #tpu.dimension_semantics<arbitrary>], iteration_bounds = array<i64: 1, 1, 1>, scalar_prefetch = 0 : i64, scratch_operands = 1 : i64, tpu.core_type = #tpu.core_type<tc>, window_params = [{transform_indices = @transform_0, window_bounds = array<i64: 8, 256>}, {transform_indices = @transform_1, window_bounds = array<i64: 256, 128>}, {transform_indices = @transform_2, window_bounds = array<i64: 8, 128>}]} {
    %c0_i32 = arith.constant 0 : i32
    %0 = arith.cmpi eq, %arg2, %c0_i32 : i32
    %1 = arith.extui %0 : i1 to i32
    %c0_i32_0 = arith.constant 0 : i32
    %2 = arith.cmpi ne, %1, %c0_i32_0 : i32
    scf.if %2 {
      %cst_10 = arith.constant 0.000000e+00 : f32
      %12 = vector.broadcast %cst_10 : f32 to vector<8x128xf32>
      %c0_11 = arith.constant 0 : index
      %c0_12 = arith.constant 0 : index
      %13 = vector.load %arg6[%c0_11, %c0_12] : memref<8x128xf32, #tpu.memory_space<vmem>>, vector<8x128xf32>
      tpu.vector_store %arg6[%c0_11, %c0_12], %12 {strides = array<i32>} : memref<8x128xf32, #tpu.memory_space<vmem>>, vector<8x128xf32>,
    } else {
    }
    %c0 = arith.constant 0 : index
    %c0_1 = arith.constant 0 : index
    %3 = vector.load %arg6[%c0, %c0_1] : memref<8x128xf32, #tpu.memory_space<vmem>>, vector<8x128xf32>
    %c0_2 = arith.constant 0 : index
    %c0_3 = arith.constant 0 : index
    %4 = vector.load %arg3[%c0_2, %c0_3] : memref<8x256xbf16, #tpu.memory_space<vmem>>, vector<8x256xbf16>
    %c0_4 = arith.constant 0 : index
    %c0_5 = arith.constant 0 : index
    %5 = vector.load %arg4[%c0_4, %c0_5] : memref<256x128xbf16, #tpu.memory_space<vmem>>, vector<256x128xbf16>
    %cst = arith.constant dense<0.000000e+00> : vector<8x128xf32>
    %6 = tpu.matmul %4, %5, %cst {dimension_numbers = #tpu.dot_dimension_numbers<[1], [0], [0], [1], [0, 0, 1, 1], [], []>} : vector<8x256xbf16>, vector<256x128xbf16>, vector<8x128xf32> -> vector<8x128xf32>
    %7 = arith.addf %3, %6 : vector<8x128xf32>
    %c0_6 = arith.constant 0 : index
    %c0_7 = arith.constant 0 : index
    %8 = vector.load %arg6[%c0_6, %c0_7] : memref<8x128xf32, #tpu.memory_space<vmem>>, vector<8x128xf32>
    tpu.vector_store %arg6[%c0_6, %c0_7], %7 {strides = array<i32>} : memref<8x128xf32, #tpu.memory_space<vmem>>, vector<8x128xf32>,
    %c0_i32_8 = arith.constant 0 : i32
    %9 = arith.cmpi eq, %arg2, %c0_i32_8 : i32
    %10 = arith.extui %9 : i1 to i32
    %c0_i32_9 = arith.constant 0 : i32
    %11 = arith.cmpi ne, %10, %c0_i32_9 : i32
    scf.if %11 {
      %c0_10 = arith.constant 0 : index
      %c0_11 = arith.constant 0 : index
      %12 = vector.load %arg6[%c0_10, %c0_11] : memref<8x128xf32, #tpu.memory_space<vmem>>, vector<8x128xf32>
      %13 = arith.truncf %12 : vector<8x128xf32> to vector<8x128xbf16>
      %c0_12 = arith.constant 0 : index
      %c0_13 = arith.constant 0 : index
      %14 = vector.load %arg5[%c0_12, %c0_13] : memref<8x128xbf16, #tpu.memory_space<vmem>>, vector<8x128xbf16>
      tpu.vector_store %arg5[%c0_12, %c0_13], %13 {strides = array<i32>} : memref<8x128xbf16, #tpu.memory_space<vmem>>, vector<8x128xbf16>,
    } else {
    }
    return
  }
  func.func @transform_0(%arg0: i32, %arg1: i32, %arg2: i32) -> (i32, i32) {
    %c0_i32 = arith.constant 0 : i32
    return %arg0, %arg2 : i32, i32
  }
  func.func @transform_1(%arg0: i32, %arg1: i32, %arg2: i32) -> (i32, i32) {
    %c0_i32 = arith.constant 0 : i32
    return %arg2, %arg1 : i32, i32
  }
  func.func @transform_2(%arg0: i32, %arg1: i32, %arg2: i32) -> (i32, i32) {
    %c0_i32 = arith.constant 0 : i32
    return %arg0, %arg1 : i32, i32
  }
}

module attributes {stable_mosaic.version = 11 : i64} {
  func.func @_mm_kernel(%arg0: i32, %arg1: i32, %arg2: i32, %arg3: memref<8x256xbf16, #tpu.memory_space<vmem>>, %arg4: memref<256x128xbf16, #tpu.memory_space<vmem>>, %arg5: memref<8x128xbf16, #tpu.memory_space<vmem>>, %arg6: memref<1x1x128xf32, #tpu.memory_space<vmem>>, %arg7: memref<1x1x128xf32, #tpu.memory_space<vmem>>, %arg8: memref<8x128xf32, #tpu.memory_space<vmem>>) attributes {dimension_semantics = [#tpu.dimension_semantics<parallel>, #tpu.dimension_semantics<parallel>, #tpu.dimension_semantics<arbitrary>], iteration_bounds = array<i64: 1, 1, 1>, scalar_prefetch = 0 : i64, scratch_operands = 1 : i64, tpu.core_type = #tpu.core_type<tc>, window_params = [{transform_indices = @transform_0, window_bounds = array<i64: 8, 256>}, {transform_indices = @transform_1, window_bounds = array<i64: 256, 128>}, {transform_indices = @transform_2, window_bounds = array<i64: 8, 128>}, {transform_indices = @transform_3, window_bounds = array<i64: 1, 1, 128>}, {transform_indices = @transform_4, window_bounds = array<i64: 1, 1, 128>}]} {
    %c0_i32 = arith.constant 0 : i32
    %0 = arith.cmpi eq, %arg2, %c0_i32 : i32
    %1 = arith.extui %0 : i1 to i32
    %c0_i32_0 = arith.constant 0 : i32
    %2 = arith.cmpi ne, %1, %c0_i32_0 : i32
    scf.if %2 {
      %cst_10 = arith.constant 0.000000e+00 : f32
      %12 = vector.broadcast %cst_10 : f32 to vector<8x128xf32>
      %c0_11 = arith.constant 0 : index
      %c0_12 = arith.constant 0 : index
      %13 = vector.load %arg8[%c0_11, %c0_12] : memref<8x128xf32, #tpu.memory_space<vmem>>, vector<8x128xf32>
      tpu.vector_store %arg8[%c0_11, %c0_12], %12 {strides = array<i32>} : memref<8x128xf32, #tpu.memory_space<vmem>>, vector<8x128xf32>,
    } else {
    }
    %c0 = arith.constant 0 : index
    %c0_1 = arith.constant 0 : index
    %3 = vector.load %arg8[%c0, %c0_1] : memref<8x128xf32, #tpu.memory_space<vmem>>, vector<8x128xf32>
    %c0_2 = arith.constant 0 : index
    %c0_3 = arith.constant 0 : index
    %4 = vector.load %arg3[%c0_2, %c0_3] : memref<8x256xbf16, #tpu.memory_space<vmem>>, vector<8x256xbf16>
    %c0_4 = arith.constant 0 : index
    %c0_5 = arith.constant 0 : index
    %5 = vector.load %arg4[%c0_4, %c0_5] : memref<256x128xbf16, #tpu.memory_space<vmem>>, vector<256x128xbf16>
    %cst = arith.constant dense<0.000000e+00> : vector<8x128xf32>
    %6 = tpu.matmul %4, %5, %cst {dimension_numbers = #tpu.dot_dimension_numbers<[1], [0], [0], [1], [0, 0, 1, 1], [], []>} : vector<8x256xbf16>, vector<256x128xbf16>, vector<8x128xf32> -> vector<8x128xf32>
    %7 = arith.addf %3, %6 : vector<8x128xf32>
    %c0_6 = arith.constant 0 : index
    %c0_7 = arith.constant 0 : index
    %8 = vector.load %arg8[%c0_6, %c0_7] : memref<8x128xf32, #tpu.memory_space<vmem>>, vector<8x128xf32>
    tpu.vector_store %arg8[%c0_6, %c0_7], %7 {strides = array<i32>} : memref<8x128xf32, #tpu.memory_space<vmem>>, vector<8x128xf32>,
    %c0_i32_8 = arith.constant 0 : i32
    %9 = arith.cmpi eq, %arg2, %c0_i32_8 : i32
    %10 = arith.extui %9 : i1 to i32
    %c0_i32_9 = arith.constant 0 : i32
    %11 = arith.cmpi ne, %10, %c0_i32_9 : i32
    scf.if %11 {
      %c0_10 = arith.constant 0 : index
      %c0_11 = arith.constant 0 : index
      %12 = vector.load %arg8[%c0_10, %c0_11] : memref<8x128xf32, #tpu.memory_space<vmem>>, vector<8x128xf32>
      %13 = arith.truncf %12 : vector<8x128xf32> to vector<8x128xbf16>
      %c0_12 = arith.constant 0 : index
      %c0_13 = arith.constant 0 : index
      %14 = vector.load %arg5[%c0_12, %c0_13] : memref<8x128xbf16, #tpu.memory_space<vmem>>, vector<8x128xbf16>
      tpu.vector_store %arg5[%c0_12, %c0_13], %13 {strides = array<i32>} : memref<8x128xbf16, #tpu.memory_space<vmem>>, vector<8x128xbf16>,
      %cst_14 = arith.constant dense<0.000000e+00> : vector<128xf32>
      %15 = vector.multi_reduction <add>, %12, %cst_14 [0] : vector<8x128xf32> to vector<128xf32>
      %16 = vector.shape_cast %15 : vector<128xf32> to vector<1x128xf32>
      %17 = vector.shape_cast %16 : vector<1x128xf32> to vector<1x1x128xf32>
      %c0_15 = arith.constant 0 : index
      %c0_16 = arith.constant 0 : index
      %c0_17 = arith.constant 0 : index
      %18 = vector.load %arg6[%c0_15, %c0_16, %c0_17] : memref<1x1x128xf32, #tpu.memory_space<vmem>>, vector<1x1x128xf32>
      tpu.vector_store %arg6[%c0_15, %c0_16, %c0_17], %17 {strides = array<i32>} : memref<1x1x128xf32, #tpu.memory_space<vmem>>, vector<1x1x128xf32>,
      %19 = arith.mulf %12, %12 : vector<8x128xf32>
      %cst_18 = arith.constant dense<0.000000e+00> : vector<128xf32>
      %20 = vector.multi_reduction <add>, %19, %cst_18 [0] : vector<8x128xf32> to vector<128xf32>
      %21 = vector.shape_cast %20 : vector<128xf32> to vector<1x128xf32>
      %22 = vector.shape_cast %21 : vector<1x128xf32> to vector<1x1x128xf32>
      %c0_19 = arith.constant 0 : index
      %c0_20 = arith.constant 0 : index
      %c0_21 = arith.constant 0 : index
      %23 = vector.load %arg7[%c0_19, %c0_20, %c0_21] : memref<1x1x128xf32, #tpu.memory_space<vmem>>, vector<1x1x128xf32>
      tpu.vector_store %arg7[%c0_19, %c0_20, %c0_21], %22 {strides = array<i32>} : memref<1x1x128xf32, #tpu.memory_space<vmem>>, vector<1x1x128xf32>,
    } else {
    }
    return
  }
  func.func @transform_0(%arg0: i32, %arg1: i32, %arg2: i32) -> (i32, i32) {
    %c0_i32 = arith.constant 0 : i32
    return %arg0, %arg2 : i32, i32
  }
  func.func @transform_1(%arg0: i32, %arg1: i32, %arg2: i32) -> (i32, i32) {
    %c0_i32 = arith.constant 0 : i32
    return %arg2, %arg1 : i32, i32
  }
  func.func @transform_2(%arg0: i32, %arg1: i32, %arg2: i32) -> (i32, i32) {
    %c0_i32 = arith.constant 0 : i32
    return %arg0, %arg1 : i32, i32
  }
  func.func @transform_3(%arg0: i32, %arg1: i32, %arg2: i32) -> (i32, i32, i32) {
    %c0_i32 = arith.constant 0 : i32
    %c0_i32_0 = arith.constant 0 : i32
    return %arg0, %c0_i32, %arg1 : i32, i32, i32
  }
  func.func @transform_4(%arg0: i32, %arg1: i32, %arg2: i32) -> (i32, i32, i32) {
    %c0_i32 = arith.constant 0 : i32
    %c0_i32_0 = arith.constant 0 : i32
    return %arg0, %c0_i32, %arg1 : i32, i32, i32
  }
}

module attributes {stable_mosaic.version = 11 : i64} {
  func.func @_mm_kernel(%arg0: i32, %arg1: i32, %arg2: i32, %arg3: memref<32x384xbf16, #tpu.memory_space<vmem>>, %arg4: memref<384x128xbf16, #tpu.memory_space<vmem>>, %arg5: memref<32x128xbf16, #tpu.memory_space<vmem>>, %arg6: memref<1x1x128xf32, #tpu.memory_space<vmem>>, %arg7: memref<1x1x128xf32, #tpu.memory_space<vmem>>, %arg8: memref<32x128xf32, #tpu.memory_space<vmem>>) attributes {dimension_semantics = [#tpu.dimension_semantics<parallel>, #tpu.dimension_semantics<parallel>, #tpu.dimension_semantics<arbitrary>], iteration_bounds = array<i64: 1, 1, 1>, scalar_prefetch = 0 : i64, scratch_operands = 1 : i64, tpu.core_type = #tpu.core_type<tc>, window_params = [{transform_indices = @transform_0, window_bounds = array<i64: 32, 384>}, {transform_indices = @transform_1, window_bounds = array<i64: 384, 128>}, {transform_indices = @transform_2, window_bounds = array<i64: 32, 128>}, {transform_indices = @transform_3, window_bounds = array<i64: 1, 1, 128>}, {transform_indices = @transform_4, window_bounds = array<i64: 1, 1, 128>}]} {
    %c0_i32 = arith.constant 0 : i32
    %0 = arith.cmpi eq, %arg2, %c0_i32 : i32
    %1 = arith.extui %0 : i1 to i32
    %c0_i32_0 = arith.constant 0 : i32
    %2 = arith.cmpi ne, %1, %c0_i32_0 : i32
    scf.if %2 {
      %cst_10 = arith.constant 0.000000e+00 : f32
      %12 = vector.broadcast %cst_10 : f32 to vector<32x128xf32>
      %c0_11 = arith.constant 0 : index
      %c0_12 = arith.constant 0 : index
      %13 = vector.load %arg8[%c0_11, %c0_12] : memref<32x128xf32, #tpu.memory_space<vmem>>, vector<32x128xf32>
      tpu.vector_store %arg8[%c0_11, %c0_12], %12 {strides = array<i32>} : memref<32x128xf32, #tpu.memory_space<vmem>>, vector<32x128xf32>,
    } else {
    }
    %c0 = arith.constant 0 : index
    %c0_1 = arith.constant 0 : index
    %3 = vector.load %arg8[%c0, %c0_1] : memref<32x128xf32, #tpu.memory_space<vmem>>, vector<32x128xf32>
    %c0_2 = arith.constant 0 : index
    %c0_3 = arith.constant 0 : index
    %4 = vector.load %arg3[%c0_2, %c0_3] : memref<32x384xbf16, #tpu.memory_space<vmem>>, vector<32x384xbf16>
    %c0_4 = arith.constant 0 : index
    %c0_5 = arith.constant 0 : index
    %5 = vector.load %arg4[%c0_4, %c0_5] : memref<384x128xbf16, #tpu.memory_space<vmem>>, vector<384x128xbf16>
    %cst = arith.constant dense<0.000000e+00> : vector<32x128xf32>
    %6 = tpu.matmul %4, %5, %cst {dimension_numbers = #tpu.dot_dimension_numbers<[1], [0], [0], [1], [0, 0, 1, 1], [], []>} : vector<32x384xbf16>, vector<384x128xbf16>, vector<32x128xf32> -> vector<32x128xf32>
    %7 = arith.addf %3, %6 : vector<32x128xf32>
    %c0_6 = arith.constant 0 : index
    %c0_7 = arith.constant 0 : index
    %8 = vector.load %arg8[%c0_6, %c0_7] : memref<32x128xf32, #tpu.memory_space<vmem>>, vector<32x128xf32>
    tpu.vector_store %arg8[%c0_6, %c0_7], %7 {strides = array<i32>} : memref<32x128xf32, #tpu.memory_space<vmem>>, vector<32x128xf32>,
    %c0_i32_8 = arith.constant 0 : i32
    %9 = arith.cmpi eq, %arg2, %c0_i32_8 : i32
    %10 = arith.extui %9 : i1 to i32
    %c0_i32_9 = arith.constant 0 : i32
    %11 = arith.cmpi ne, %10, %c0_i32_9 : i32
    scf.if %11 {
      %c0_10 = arith.constant 0 : index
      %c0_11 = arith.constant 0 : index
      %12 = vector.load %arg8[%c0_10, %c0_11] : memref<32x128xf32, #tpu.memory_space<vmem>>, vector<32x128xf32>
      %13 = arith.truncf %12 : vector<32x128xf32> to vector<32x128xbf16>
      %c0_12 = arith.constant 0 : index
      %c0_13 = arith.constant 0 : index
      %14 = vector.load %arg5[%c0_12, %c0_13] : memref<32x128xbf16, #tpu.memory_space<vmem>>, vector<32x128xbf16>
      tpu.vector_store %arg5[%c0_12, %c0_13], %13 {strides = array<i32>} : memref<32x128xbf16, #tpu.memory_space<vmem>>, vector<32x128xbf16>,
      %cst_14 = arith.constant dense<0.000000e+00> : vector<128xf32>
      %15 = vector.multi_reduction <add>, %12, %cst_14 [0] : vector<32x128xf32> to vector<128xf32>
      %16 = vector.shape_cast %15 : vector<128xf32> to vector<1x128xf32>
      %17 = vector.shape_cast %16 : vector<1x128xf32> to vector<1x1x128xf32>
      %c0_15 = arith.constant 0 : index
      %c0_16 = arith.constant 0 : index
      %c0_17 = arith.constant 0 : index
      %18 = vector.load %arg6[%c0_15, %c0_16, %c0_17] : memref<1x1x128xf32, #tpu.memory_space<vmem>>, vector<1x1x128xf32>
      tpu.vector_store %arg6[%c0_15, %c0_16, %c0_17], %17 {strides = array<i32>} : memref<1x1x128xf32, #tpu.memory_space<vmem>>, vector<1x1x128xf32>,
      %19 = arith.mulf %12, %12 : vector<32x128xf32>
      %cst_18 = arith.constant dense<0.000000e+00> : vector<128xf32>
      %20 = vector.multi_reduction <add>, %19, %cst_18 [0] : vector<32x128xf32> to vector<128xf32>
      %21 = vector.shape_cast %20 : vector<128xf32> to vector<1x128xf32>
      %22 = vector.shape_cast %21 : vector<1x128xf32> to vector<1x1x128xf32>
      %c0_19 = arith.constant 0 : index
      %c0_20 = arith.constant 0 : index
      %c0_21 = arith.constant 0 : index
      %23 = vector.load %arg7[%c0_19, %c0_20, %c0_21] : memref<1x1x128xf32, #tpu.memory_space<vmem>>, vector<1x1x128xf32>
      tpu.vector_store %arg7[%c0_19, %c0_20, %c0_21], %22 {strides = array<i32>} : memref<1x1x128xf32, #tpu.memory_space<vmem>>, vector<1x1x128xf32>,
    } else {
    }
    return
  }
  func.func @transform_0(%arg0: i32, %arg1: i32, %arg2: i32) -> (i32, i32) {
    %c0_i32 = arith.constant 0 : i32
    return %arg0, %arg2 : i32, i32
  }
  func.func @transform_1(%arg0: i32, %arg1: i32, %arg2: i32) -> (i32, i32) {
    %c0_i32 = arith.constant 0 : i32
    return %arg2, %arg1 : i32, i32
  }
  func.func @transform_2(%arg0: i32, %arg1: i32, %arg2: i32) -> (i32, i32) {
    %c0_i32 = arith.constant 0 : i32
    return %arg0, %arg1 : i32, i32
  }
  func.func @transform_3(%arg0: i32, %arg1: i32, %arg2: i32) -> (i32, i32, i32) {
    %c0_i32 = arith.constant 0 : i32
    %c0_i32_0 = arith.constant 0 : i32
    return %arg0, %c0_i32, %arg1 : i32, i32, i32
  }
  func.func @transform_4(%arg0: i32, %arg1: i32, %arg2: i32) -> (i32, i32, i32) {
    %c0_i32 = arith.constant 0 : i32
    %c0_i32_0 = arith.constant 0 : i32
    return %arg0, %c0_i32, %arg1 : i32, i32, i32
  }
}

module attributes {stable_mosaic.version = 11 : i64} {
  func.func @_mm_kernel(%arg0: i32, %arg1: i32, %arg2: i32, %arg3: memref<128x256xbf16, #tpu.memory_space<vmem>>, %arg4: memref<256x128xbf16, #tpu.memory_space<vmem>>, %arg5: memref<1x128xf32, #tpu.memory_space<vmem>>, %arg6: memref<128x128xf32, #tpu.memory_space<vmem>>, %arg7: memref<128x128xf32, #tpu.memory_space<vmem>>) attributes {dimension_semantics = [#tpu.dimension_semantics<parallel>, #tpu.dimension_semantics<parallel>, #tpu.dimension_semantics<arbitrary>], iteration_bounds = array<i64: 1, 1, 1>, scalar_prefetch = 0 : i64, scratch_operands = 1 : i64, tpu.core_type = #tpu.core_type<tc>, window_params = [{transform_indices = @transform_0, window_bounds = array<i64: 128, 256>}, {transform_indices = @transform_1, window_bounds = array<i64: 256, 128>}, {transform_indices = @transform_2, window_bounds = array<i64: 1, 128>}, {transform_indices = @transform_3, window_bounds = array<i64: 128, 128>}]} {
    %c0_i32 = arith.constant 0 : i32
    %0 = arith.cmpi eq, %arg2, %c0_i32 : i32
    %1 = arith.extui %0 : i1 to i32
    %c0_i32_0 = arith.constant 0 : i32
    %2 = arith.cmpi ne, %1, %c0_i32_0 : i32
    scf.if %2 {
      %cst_10 = arith.constant 0.000000e+00 : f32
      %12 = vector.broadcast %cst_10 : f32 to vector<128x128xf32>
      %c0_11 = arith.constant 0 : index
      %c0_12 = arith.constant 0 : index
      %13 = vector.load %arg7[%c0_11, %c0_12] : memref<128x128xf32, #tpu.memory_space<vmem>>, vector<128x128xf32>
      tpu.vector_store %arg7[%c0_11, %c0_12], %12 {strides = array<i32>} : memref<128x128xf32, #tpu.memory_space<vmem>>, vector<128x128xf32>,
    } else {
    }
    %c0 = arith.constant 0 : index
    %c0_1 = arith.constant 0 : index
    %3 = vector.load %arg7[%c0, %c0_1] : memref<128x128xf32, #tpu.memory_space<vmem>>, vector<128x128xf32>
    %c0_2 = arith.constant 0 : index
    %c0_3 = arith.constant 0 : index
    %4 = vector.load %arg3[%c0_2, %c0_3] : memref<128x256xbf16, #tpu.memory_space<vmem>>, vector<128x256xbf16>
    %c0_4 = arith.constant 0 : index
    %c0_5 = arith.constant 0 : index
    %5 = vector.load %arg4[%c0_4, %c0_5] : memref<256x128xbf16, #tpu.memory_space<vmem>>, vector<256x128xbf16>
    %cst = arith.constant dense<0.000000e+00> : vector<128x128xf32>
    %6 = tpu.matmul %4, %5, %cst {dimension_numbers = #tpu.dot_dimension_numbers<[1], [0], [0], [1], [0, 0, 1, 1], [], []>} : vector<128x256xbf16>, vector<256x128xbf16>, vector<128x128xf32> -> vector<128x128xf32>
    %7 = arith.addf %3, %6 : vector<128x128xf32>
    %c0_6 = arith.constant 0 : index
    %c0_7 = arith.constant 0 : index
    %8 = vector.load %arg7[%c0_6, %c0_7] : memref<128x128xf32, #tpu.memory_space<vmem>>, vector<128x128xf32>
    tpu.vector_store %arg7[%c0_6, %c0_7], %7 {strides = array<i32>} : memref<128x128xf32, #tpu.memory_space<vmem>>, vector<128x128xf32>,
    %c0_i32_8 = arith.constant 0 : i32
    %9 = arith.cmpi eq, %arg2, %c0_i32_8 : i32
    %10 = arith.extui %9 : i1 to i32
    %c0_i32_9 = arith.constant 0 : i32
    %11 = arith.cmpi ne, %10, %c0_i32_9 : i32
    scf.if %11 {
      %c0_10 = arith.constant 0 : index
      %c0_11 = arith.constant 0 : index
      %12 = vector.load %arg7[%c0_10, %c0_11] : memref<128x128xf32, #tpu.memory_space<vmem>>, vector<128x128xf32>
      %c0_12 = arith.constant 0 : index
      %c0_13 = arith.constant 0 : index
      %13 = vector.load %arg5[%c0_12, %c0_13] : memref<1x128xf32, #tpu.memory_space<vmem>>, vector<1x128xf32>
      %14 = vector.broadcast %13 : vector<1x128xf32> to vector<128x128xf32>
      %15 = arith.addf %12, %14 : vector<128x128xf32>
      %16 = math.tanh %15 : vector<128x128xf32>
      %c0_14 = arith.constant 0 : index
      %c0_15 = arith.constant 0 : index
      %17 = vector.load %arg6[%c0_14, %c0_15] : memref<128x128xf32, #tpu.memory_space<vmem>>, vector<128x128xf32>
      tpu.vector_store %arg6[%c0_14, %c0_15], %16 {strides = array<i32>} : memref<128x128xf32, #tpu.memory_space<vmem>>, vector<128x128xf32>,
    } else {
    }
    return
  }
  func.func @transform_0(%arg0: i32, %arg1: i32, %arg2: i32) -> (i32, i32) {
    %c0_i32 = arith.constant 0 : i32
    return %arg0, %arg2 : i32, i32
  }
  func.func @transform_1(%arg0: i32, %arg1: i32, %arg2: i32) -> (i32, i32) {
    %c0_i32 = arith.constant 0 : i32
    return %arg2, %arg1 : i32, i32
  }
  func.func @transform_2(%arg0: i32, %arg1: i32, %arg2: i32) -> (i32, i32) {
    %c0_i32 = arith.constant 0 : i32
    %c0_i32_0 = arith.constant 0 : i32
    return %c0_i32, %arg1 : i32, i32
  }
  func.func @transform_3(%arg0: i32, %arg1: i32, %arg2: i32) -> (i32, i32) {
    %c0_i32 = arith.constant 0 : i32
    return %arg0, %arg1 : i32, i32
  }
}

</mosaic_0001>

<llo_original>
// kernel: _lambda_.6
$region0: #{_lambda_.6}
  #allocation0 [shape = 'u32[]', space=smem, size = 0x4, offset = 0x4, fixed_abs, tag = 'smem constant byte address 0x4 - core index']
  #allocation1 [shape = 'u32[72,128]{1,0:T(1,128)}', space=vmem, size = 0x9000, scoped, tag = 'internal scratch']
  #allocation2 [shape = 'f32[128,128]{1,0:T(8,128)}', space=vmem, size = 0x10000, scoped, tag = 'scratch operand']
  %s0 = inlined_call_operand.vmem [shape: bf16[128,128], index: 0, kind: input, shape index: {}]
  %s1 = inlined_call_operand.vmem [shape: bf16[128,128], index: 1, kind: input, shape index: {}]
  %s2 = inlined_call_operand.vmem [shape: bf16[128,128], index: 2, kind: output, shape index: {}]
  %s3 = sld [smem:[#allocation0]]
  $region26: #{_lambda_.6} parent=0
    _
  %s5 = ssub.s32 1, %s3
  %s6 = scalar_select 0, %s5, %s3
  // Predicated region
  $region2: #{_lambda_.6} parent=0 // pred_check
    _
  $region3: #{_lambda_.6} parent=0 // pred_check_branch
    %8 = sbr.rel (0) target = $region5
  $region4: #{_lambda_.6} parent=0 // pred_region
    _
  $region5: #{_lambda_.6} parent=0 // pred_fallthru
    _
  // Predicated region
  $region6: #{_lambda_.6} parent=0 // pred_check
    _
  $region7: #{_lambda_.6} parent=0 // pred_check_branch
    %10 = sbr.rel (0) target = $region9
  $region8: #{_lambda_.6} parent=0 // pred_region
    _
  $region9: #{_lambda_.6} parent=0 // pred_fallthru
    _
  %p11 = scmp.eq.s32.totalorder 0, 0
  // Predicated region
  $region10: #{_lambda_.6} parent=0 // pred_check
    %p12 = pneg %p11
  $region11: #{_lambda_.6} parent=0 // pred_check_branch
    %14 = sbr.rel (%p12) target = $region13
  $region12: #{_lambda_.6} parent=0 // pred_region
    %15 = vst [vmem:[#allocation2] sm:$0xff] 0.0
    %16 = vst [vmem:[#allocation2 + $0x8] sm:$0xff] 0.0
    %17 = vst [vmem:[#allocation2 + $0x10] sm:$0xff] 0.0
    %18 = vst [vmem:[#allocation2 + $0x18] sm:$0xff] 0.0
    %19 = vst [vmem:[#allocation2 + $0x20] sm:$0xff] 0.0
    %20 = vst [vmem:[#allocation2 + $0x28] sm:$0xff] 0.0
    %21 = vst [vmem:[#allocation2 + $0x30] sm:$0xff] 0.0
    %22 = vst [vmem:[#allocation2 + $0x38] sm:$0xff] 0.0
    %23 = vst [vmem:[#allocation2 + $0x40] sm:$0xff] 0.0
    %24 = vst [vmem:[#allocation2 + $0x48] sm:$0xff] 0.0
    %25 = vst [vmem:[#allocation2 + $0x50] sm:$0xff] 0.0
    %26 = vst [vmem:[#allocation2 + $0x58] sm:$0xff] 0.0
    %27 = vst [vmem:[#allocation2 + $0x60] sm:$0xff] 0.0
    %28 = vst [vmem:[#allocation2 + $0x68] sm:$0xff] 0.0
    %29 = vst [vmem:[#allocation2 + $0x70] sm:$0xff] 0.0
    %30 = vst [vmem:[#allocation2 + $0x78] sm:$0xff] 0.0
  $region13: #{_lambda_.6} parent=0 // pred_fallthru
    _
  %v31 = vld [vmem:[#allocation2] sm:$0xff]
  %v32 = vld [vmem:[#allocation2 + $0x8] sm:$0xff]
  %v33 = vld [vmem:[#allocation2 + $0x10] sm:$0xff]
  %v34 = vld [vmem:[#allocation2 + $0x18] sm:$0xff]
  %v35 = vld [vmem:[#allocation2 + $0x20] sm:$0xff]
  %v36 = vld [vmem:[#allocation2 + $0x28] sm:$0xff]
  %v37 = vld [vmem:[#allocation2 + $0x30] sm:$0xff]
  %v38 = vld [vmem:[#allocation2 + $0x38] sm:$0xff]
  %v39 = vld [vmem:[#allocation2 + $0x40] sm:$0xff]
  %v40 = vld [vmem:[#allocation2 + $0x48] sm:$0xff]
  %v41 = vld [vmem:[#allocation2 + $0x50] sm:$0xff]
  %v42 = vld [vmem:[#allocation2 + $0x58] sm:$0xff]
  %v43 = vld [vmem:[#allocation2 + $0x60] sm:$0xff]
  %v44 = vld [vmem:[#allocation2 + $0x68] sm:$0xff]
  %v45 = vld [vmem:[#allocation2 + $0x70] sm:$0xff]
  %v46 = vld [vmem:[#allocation2 + $0x78] sm:$0xff]
  %v47 = vld [vmem:[%s0] sm:$0xf]
  %v48 = vld [vmem:[%s0 + $0x4] sm:$0xf]
  %v49 = vld [vmem:[%s0 + $0x8] sm:$0xf]
  %v50 = vld [vmem:[%s0 + $0xc] sm:$0xf]
  %v51 = vld [vmem:[%s0 + $0x10] sm:$0xf]
  %v52 = vld [vmem:[%s0 + $0x14] sm:$0xf]
  %v53 = vld [vmem:[%s0 + $0x18] sm:$0xf]
  %v54 = vld [vmem:[%s0 + $0x1c] sm:$0xf]
  %v55 = vld [vmem:[%s0 + $0x20] sm:$0xf]
  %v56 = vld [vmem:[%s0 + $0x24] sm:$0xf]
  %v57 = vld [vmem:[%s0 + $0x28] sm:$0xf]
  %v58 = vld [vmem:[%s0 + $0x2c] sm:$0xf]
  %v59 = vld [vmem:[%s0 + $0x30] sm:$0xf]
  %v60 = vld [vmem:[%s0 + $0x34] sm:$0xf]
  %v61 = vld [vmem:[%s0 + $0x38] sm:$0xf]
  %v62 = vld [vmem:[%s0 + $0x3c] sm:$0xf]
  %v63 = vld [vmem:[%s1] sm:$0xf]
  %v64 = vld [vmem:[%s1 + $0x4] sm:$0xf]
  %v65 = vld [vmem:[%s1 + $0x8] sm:$0xf]
  %v66 = vld [vmem:[%s1 + $0xc] sm:$0xf]
  %v67 = vld [vmem:[%s1 + $0x10] sm:$0xf]
  %v68 = vld [vmem:[%s1 + $0x14] sm:$0xf]
  %v69 = vld [vmem:[%s1 + $0x18] sm:$0xf]
  %v70 = vld [vmem:[%s1 + $0x1c] sm:$0xf]
  %v71 = vld [vmem:[%s1 + $0x20] sm:$0xf]
  %v72 = vld [vmem:[%s1 + $0x24] sm:$0xf]
  %v73 = vld [vmem:[%s1 + $0x28] sm:$0xf]
  %v74 = vld [vmem:[%s1 + $0x2c] sm:$0xf]
  %v75 = vld [vmem:[%s1 + $0x30] sm:$0xf]
  %v76 = vld [vmem:[%s1 + $0x34] sm:$0xf]
  %v77 = vld [vmem:[%s1 + $0x38] sm:$0xf]
  %v78 = vld [vmem:[%s1 + $0x3c] sm:$0xf]
  %v95 = vunpack.c.l.b16 %v47
  %v96 = vunpack.c.l.b16 %v48
  %v97 = vunpack.c.l.b16 %v49
  %v98 = vunpack.c.l.b16 %v50
  %v99 = vunpack.c.l.b16 %v51
  %v100 = vunpack.c.l.b16 %v52
  %v101 = vunpack.c.l.b16 %v53
  %v102 = vunpack.c.l.b16 %v54
  %v103 = vunpack.c.l.b16 %v55
  %v104 = vunpack.c.l.b16 %v56
  %v105 = vunpack.c.l.b16 %v57
  %v106 = vunpack.c.l.b16 %v58
  %v107 = vunpack.c.l.b16 %v59
  %v108 = vunpack.c.l.b16 %v60
  %v109 = vunpack.c.l.b16 %v61
  %v110 = vunpack.c.l.b16 %v62
  %v111 = vpack.c.b16 %v96, %v95
  %v112 = vpack.c.b16 %v98, %v97
  %v113 = vpack.c.b16 %v100, %v99
  %v114 = vpack.c.b16 %v102, %v101
  %v115 = vpack.c.b16 %v104, %v103
  %v116 = vpack.c.b16 %v106, %v105
  %v117 = vpack.c.b16 %v108, %v107
  %v118 = vpack.c.b16 %v110, %v109
  %v143 = vunpack.c.l.b16 %v63
  %v144 = vunpack.c.l.b16 %v64
  %v145 = vunpack.c.l.b16 %v65
  %v146 = vunpack.c.l.b16 %v66
  %v147 = vunpack.c.l.b16 %v67
  %v148 = vunpack.c.l.b16 %v68
  %v149 = vunpack.c.l.b16 %v69
  %v150 = vunpack.c.l.b16 %v70
  %v151 = vunpack.c.l.b16 %v71
  %v152 = vunpack.c.l.b16 %v72
  %v153 = vunpack.c.l.b16 %v73
  %v154 = vunpack.c.l.b16 %v74
  %v155 = vunpack.c.l.b16 %v75
  %v156 = vunpack.c.l.b16 %v76
  %v157 = vunpack.c.l.b16 %v77
  %v158 = vunpack.c.l.b16 %v78
  %v159 = vpack.c.b16 %v144, %v143
  %v160 = vpack.c.b16 %v146, %v145
  %v161 = vpack.c.b16 %v148, %v147
  %v162 = vpack.c.b16 %v150, %v149
  %v163 = vpack.c.b16 %v152, %v151
  %v164 = vpack.c.b16 %v154, %v153
  %v165 = vpack.c.b16 %v156, %v155
  %v166 = vpack.c.b16 %v158, %v157
  %175 = vmatpush.bf16.msra.mxu0 %v166
  %176 = vmatpush.bf16.msra.mxu0 %v165
  %177 = vmatpush.bf16.msra.mxu0 %v164
  %178 = vmatpush.bf16.msra.mxu0 %v163
  %179 = vmatpush.bf16.msra.mxu0 %v162
  %180 = vmatpush.bf16.msra.mxu0 %v161
  %181 = vmatpush.bf16.msra.mxu0 %v160
  %182 = vmatpush.bf16.msra.mxu0 %v159
  %183 = vmatmul.bf16.gmra.mxu0 %v111
  %v184 = vpop.f32.mrf.mxu0
  %v185 = vadd.f32 0.0, %v184
  %v186 = vpop.f32.mrf.mxu0
  %v187 = vadd.f32 0.0, %v186
  %188 = vmatmul.bf16.gmra.mxu0 %v112
  %v189 = vpop.f32.mrf.mxu0
  %v190 = vadd.f32 0.0, %v189
  %v191 = vpop.f32.mrf.mxu0
  %v192 = vadd.f32 0.0, %v191
  %193 = vmatmul.bf16.gmra.mxu0 %v113
  %v194 = vpop.f32.mrf.mxu0
  %v195 = vadd.f32 0.0, %v194
  %v196 = vpop.f32.mrf.mxu0
  %v197 = vadd.f32 0.0, %v196
  %198 = vmatmul.bf16.gmra.mxu0 %v114
  %v199 = vpop.f32.mrf.mxu0
  %v200 = vadd.f32 0.0, %v199
  %v201 = vpop.f32.mrf.mxu0
  %v202 = vadd.f32 0.0, %v201
  %203 = vmatmul.bf16.gmra.mxu0 %v115
  %v204 = vpop.f32.mrf.mxu0
  %v205 = vadd.f32 0.0, %v204
  %v206 = vpop.f32.mrf.mxu0
  %v207 = vadd.f32 0.0, %v206
  %208 = vmatmul.bf16.gmra.mxu0 %v116
  %v209 = vpop.f32.mrf.mxu0
  %v210 = vadd.f32 0.0, %v209
  %v211 = vpop.f32.mrf.mxu0
  %v212 = vadd.f32 0.0, %v211
  %213 = vmatmul.bf16.gmra.mxu0 %v117
  %v214 = vpop.f32.mrf.mxu0
  %v215 = vadd.f32 0.0, %v214
  %v216 = vpop.f32.mrf.mxu0
  %v217 = vadd.f32 0.0, %v216
  %218 = vmatmul.bf16.gmra.mxu0 %v118
  %v219 = vpop.f32.mrf.mxu0
  %v220 = vadd.f32 0.0, %v219
  %v221 = vpop.f32.mrf.mxu0
  %v222 = vadd.f32 0.0, %v221
  %223 = vdwg.mxu0
  %v224 = vadd.f32 %v31, %v185
  %v225 = vadd.f32 %v32, %v187
  %v226 = vadd.f32 %v33, %v190
  %v227 = vadd.f32 %v34, %v192
  %v228 = vadd.f32 %v35, %v195
  %v229 = vadd.f32 %v36, %v197
  %v230 = vadd.f32 %v37, %v200
  %v231 = vadd.f32 %v38, %v202
  %v232 = vadd.f32 %v39, %v205
  %v233 = vadd.f32 %v40, %v207
  %v234 = vadd.f32 %v41, %v210
  %v235 = vadd.f32 %v42, %v212
  %v236 = vadd.f32 %v43, %v215
  %v237 = vadd.f32 %v44, %v217
  %v238 = vadd.f32 %v45, %v220
  %v239 = vadd.f32 %v46, %v222
  %240 = vst [vmem:[#allocation2] sm:$0xff] %v224
  %241 = vst [vmem:[#allocation2 + $0x8] sm:$0xff] %v225
  %242 = vst [vmem:[#allocation2 + $0x10] sm:$0xff] %v226
  %243 = vst [vmem:[#allocation2 + $0x18] sm:$0xff] %v227
  %244 = vst [vmem:[#allocation2 + $0x20] sm:$0xff] %v228
  %245 = vst [vmem:[#allocation2 + $0x28] sm:$0xff] %v229
  %246 = vst [vmem:[#allocation2 + $0x30] sm:$0xff] %v230
  %247 = vst [vmem:[#allocation2 + $0x38] sm:$0xff] %v231
  %248 = vst [vmem:[#allocation2 + $0x40] sm:$0xff] %v232
  %249 = vst [vmem:[#allocation2 + $0x48] sm:$0xff] %v233
  %250 = vst [vmem:[#allocation2 + $0x50] sm:$0xff] %v234
  %251 = vst [vmem:[#allocation2 + $0x58] sm:$0xff] %v235
  %252 = vst [vmem:[#allocation2 + $0x60] sm:$0xff] %v236
  %253 = vst [vmem:[#allocation2 + $0x68] sm:$0xff] %v237
  %254 = vst [vmem:[#allocation2 + $0x70] sm:$0xff] %v238
  %255 = vst [vmem:[#allocation2 + $0x78] sm:$0xff] %v239
  // Predicated region
  $region14: #{_lambda_.6} parent=0 // pred_check
    %p256 = pneg %p11
  $region15: #{_lambda_.6} parent=0 // pred_check_branch
    %258 = sbr.rel (%p256) target = $region17
  $region16: #{_lambda_.6} parent=0 // pred_region
    %v259 = vld [vmem:[#allocation2] sm:$0xff]
    %v260 = vld [vmem:[#allocation2 + $0x8] sm:$0xff]
    %v261 = vld [vmem:[#allocation2 + $0x10] sm:$0xff]
    %v262 = vld [vmem:[#allocation2 + $0x18] sm:$0xff]
    %v263 = vld [vmem:[#allocation2 + $0x20] sm:$0xff]
    %v264 = vld [vmem:[#allocation2 + $0x28] sm:$0xff]
    %v265 = vld [vmem:[#allocation2 + $0x30] sm:$0xff]
    %v266 = vld [vmem:[#allocation2 + $0x38] sm:$0xff]
    %v267 = vld [vmem:[#allocation2 + $0x40] sm:$0xff]
    %v268 = vld [vmem:[#allocation2 + $0x48] sm:$0xff]
    %v269 = vld [vmem:[#allocation2 + $0x50] sm:$0xff]
    %v270 = vld [vmem:[#allocation2 + $0x58] sm:$0xff]
    %v271 = vld [vmem:[#allocation2 + $0x60] sm:$0xff]
    %v272 = vld [vmem:[#allocation2 + $0x68] sm:$0xff]
    %v273 = vld [vmem:[#allocation2 + $0x70] sm:$0xff]
    %v274 = vld [vmem:[#allocation2 + $0x78] sm:$0xff]
    %v275 = vpack.c.bf16 %v259, %v259
    %v276 = vpack.c.bf16 %v260, %v260
    %v277 = vpack.c.bf16 %v261, %v261
    %v278 = vpack.c.bf16 %v262, %v262
    %v279 = vpack.c.bf16 %v263, %v263
    %v280 = vpack.c.bf16 %v264, %v264
    %v281 = vpack.c.bf16 %v265, %v265
    %v282 = vpack.c.bf16 %v266, %v266
    %v283 = vpack.c.bf16 %v267, %v267
    %v284 = vpack.c.bf16 %v268, %v268
    %v285 = vpack.c.bf16 %v269, %v269
    %v286 = vpack.c.bf16 %v270, %v270
    %v287 = vpack.c.bf16 %v271, %v271
    %v288 = vpack.c.bf16 %v272, %v272
    %v289 = vpack.c.bf16 %v273, %v273
    %v290 = vpack.c.bf16 %v274, %v274
    %291 = vst [vmem:[%s2] sm:$0xf] %v275
    %292 = vst [vmem:[%s2 + $0x4] sm:$0xf] %v276
    %293 = vst [vmem:[%s2 + $0x8] sm:$0xf] %v277
    %294 = vst [vmem:[%s2 + $0xc] sm:$0xf] %v278
    %295 = vst [vmem:[%s2 + $0x10] sm:$0xf] %v279
    %296 = vst [vmem:[%s2 + $0x14] sm:$0xf] %v280
    %297 = vst [vmem:[%s2 + $0x18] sm:$0xf] %v281
    %298 = vst [vmem:[%s2 + $0x1c] sm:$0xf] %v282
    %299 = vst [vmem:[%s2 + $0x20] sm:$0xf] %v283
    %300 = vst [vmem:[%s2 + $0x24] sm:$0xf] %v284
    %301 = vst [vmem:[%s2 + $0x28] sm:$0xf] %v285
    %302 = vst [vmem:[%s2 + $0x2c] sm:$0xf] %v286
    %303 = vst [vmem:[%s2 + $0x30] sm:$0xf] %v287
    %304 = vst [vmem:[%s2 + $0x34] sm:$0xf] %v288
    %305 = vst [vmem:[%s2 + $0x38] sm:$0xf] %v289
    %306 = vst [vmem:[%s2 + $0x3c] sm:$0xf] %v290
  $region17: #{_lambda_.6} parent=0 // pred_fallthru
    _
  // Predicated region
  $region18: #{_lambda_.6} parent=0 // pred_check
    _
  $region19: #{_lambda_.6} parent=0 // pred_check_branch
    %308 = sbr.rel (0) target = $region21
  $region20: #{_lambda_.6} parent=0 // pred_region
    _
  $region21: #{_lambda_.6} parent=0 // pred_fallthru
    _
  // Predicated region
  $region22: #{_lambda_.6} parent=0 // pred_check
    _
  $region23: #{_lambda_.6} parent=0 // pred_check_branch
    %310 = sbr.rel (0) target = $region25
  $region24: #{_lambda_.6} parent=0 // pred_region
    _
  $region25: #{_lambda_.6} parent=0 // pred_fallthru
    _

// kernel: _lambda_.7
$region0: #{_lambda_.7}
  #allocation0 [shape = 'u32[]', space=smem, size = 0x4, offset = 0x4, fixed_abs, tag = 'smem constant byte address 0x4 - core index']
  #allocation1 [shape = 'u32[72,128]{1,0:T(1,128)}', space=vmem, size = 0x9000, scoped, tag = 'internal scratch']
  #allocation2 [shape = 'f32[32,128]{1,0:T(8,128)}', space=vmem, size = 0x4000, scoped, tag = 'scratch operand']
  %s0 = inlined_call_operand.vmem [shape: bf16[32,128], index: 0, kind: input, shape index: {}]
  %s1 = inlined_call_operand.vmem [shape: bf16[128,128], index: 1, kind: input, shape index: {}]
  %s2 = inlined_call_operand.vmem [shape: bf16[32,128], index: 2, kind: output, shape index: {0}]
  %s3 = inlined_call_operand.vmem [shape: f32[1,1,128], index: 3, kind: output, shape index: {1}]
  %s4 = inlined_call_operand.vmem [shape: f32[1,1,128], index: 4, kind: output, shape index: {2}]
  %5 = xla_tuple %s2, %s3, %s4
  %s6 = sld [smem:[#allocation0]]
  $region42: #{_lambda_.7} parent=0
    _
  %s8 = ssub.s32 1, %s6
  %s9 = scalar_select 0, %s8, %s6
  // Predicated region
  $region2: #{_lambda_.7} parent=0 // pred_check
    _
  $region3: #{_lambda_.7} parent=0 // pred_check_branch
    %11 = sbr.rel (0) target = $region5
  $region4: #{_lambda_.7} parent=0 // pred_region
    _
  $region5: #{_lambda_.7} parent=0 // pred_fallthru
    _
  // Predicated region
  $region6: #{_lambda_.7} parent=0 // pred_check
    _
  $region7: #{_lambda_.7} parent=0 // pred_check_branch
    %13 = sbr.rel (0) target = $region9
  $region8: #{_lambda_.7} parent=0 // pred_region
    _
  $region9: #{_lambda_.7} parent=0 // pred_fallthru
    _
  %p14 = scmp.eq.s32.totalorder 0, 0
  // Predicated region
  $region10: #{_lambda_.7} parent=0 // pred_check
    %p15 = pneg %p14
  $region11: #{_lambda_.7} parent=0 // pred_check_branch
    %17 = sbr.rel (%p15) target = $region13
  $region12: #{_lambda_.7} parent=0 // pred_region
    %18 = vst [vmem:[#allocation2] sm:$0xff] 0.0
    %19 = vst [vmem:[#allocation2 + $0x8] sm:$0xff] 0.0
    %20 = vst [vmem:[#allocation2 + $0x10] sm:$0xff] 0.0
    %21 = vst [vmem:[#allocation2 + $0x18] sm:$0xff] 0.0
  $region13: #{_lambda_.7} parent=0 // pred_fallthru
    _
  %v22 = vld [vmem:[#allocation2] sm:$0xff]
  %v23 = vld [vmem:[#allocation2 + $0x8] sm:$0xff]
  %v24 = vld [vmem:[#allocation2 + $0x10] sm:$0xff]
  %v25 = vld [vmem:[#allocation2 + $0x18] sm:$0xff]
  %v26 = vld [vmem:[%s0] sm:$0xf]
  %v27 = vld [vmem:[%s0 + $0x4] sm:$0xf]
  %v28 = vld [vmem:[%s0 + $0x8] sm:$0xf]
  %v29 = vld [vmem:[%s0 + $0xc] sm:$0xf]
  %v30 = vld [vmem:[%s1] sm:$0xf]
  %v31 = vld [vmem:[%s1 + $0x4] sm:$0xf]
  %v32 = vld [vmem:[%s1 + $0x8] sm:$0xf]
  %v33 = vld [vmem:[%s1 + $0xc] sm:$0xf]
  %v34 = vld [vmem:[%s1 + $0x10] sm:$0xf]
  %v35 = vld [vmem:[%s1 + $0x14] sm:$0xf]
  %v36 = vld [vmem:[%s1 + $0x18] sm:$0xf]
  %v37 = vld [vmem:[%s1 + $0x1c] sm:$0xf]
  %v38 = vld [vmem:[%s1 + $0x20] sm:$0xf]
  %v39 = vld [vmem:[%s1 + $0x24] sm:$0xf]
  %v40 = vld [vmem:[%s1 + $0x28] sm:$0xf]
  %v41 = vld [vmem:[%s1 + $0x2c] sm:$0xf]
  %v42 = vld [vmem:[%s1 + $0x30] sm:$0xf]
  %v43 = vld [vmem:[%s1 + $0x34] sm:$0xf]
  %v44 = vld [vmem:[%s1 + $0x38] sm:$0xf]
  %v45 = vld [vmem:[%s1 + $0x3c] sm:$0xf]
  %v50 = vunpack.c.l.b16 %v26
  %v51 = vunpack.c.l.b16 %v27
  %v52 = vunpack.c.l.b16 %v28
  %v53 = vunpack.c.l.b16 %v29
  %v54 = vpack.c.b16 %v51, %v50
  %v55 = vpack.c.b16 %v53, %v52
  %v74 = vunpack.c.l.b16 %v30
  %v75 = vunpack.c.l.b16 %v31
  %v76 = vunpack.c.l.b16 %v32
  %v77 = vunpack.c.l.b16 %v33
  %v78 = vunpack.c.l.b16 %v34
  %v79 = vunpack.c.l.b16 %v35
  %v80 = vunpack.c.l.b16 %v36
  %v81 = vunpack.c.l.b16 %v37
  %v82 = vunpack.c.l.b16 %v38
  %v83 = vunpack.c.l.b16 %v39
  %v84 = vunpack.c.l.b16 %v40
  %v85 = vunpack.c.l.b16 %v41
  %v86 = vunpack.c.l.b16 %v42
  %v87 = vunpack.c.l.b16 %v43
  %v88 = vunpack.c.l.b16 %v44
  %v89 = vunpack.c.l.b16 %v45
  %v90 = vpack.c.b16 %v75, %v74
  %v91 = vpack.c.b16 %v77, %v76
  %v92 = vpack.c.b16 %v79, %v78
  %v93 = vpack.c.b16 %v81, %v80
  %v94 = vpack.c.b16 %v83, %v82
  %v95 = vpack.c.b16 %v85, %v84
  %v96 = vpack.c.b16 %v87, %v86
  %v97 = vpack.c.b16 %v89, %v88
  %106 = vmatpush.bf16.msra.mxu0 %v97
  %107 = vmatpush.bf16.msra.mxu0 %v96
  %108 = vmatpush.bf16.msra.mxu0 %v95
  %109 = vmatpush.bf16.msra.mxu0 %v94
  %110 = vmatpush.bf16.msra.mxu0 %v93
  %111 = vmatpush.bf16.msra.mxu0 %v92
  %112 = vmatpush.bf16.msra.mxu0 %v91
  %113 = vmatpush.bf16.msra.mxu0 %v90
  %114 = vmatmul.bf16.gmra.mxu0 %v54
  %v115 = vpop.f32.mrf.mxu0
  %v116 = vadd.f32 0.0, %v115
  %v117 = vpop.f32.mrf.mxu0
  %v118 = vadd.f32 0.0, %v117
  %119 = vmatmul.bf16.gmra.mxu0 %v55
  %v120 = vpop.f32.mrf.mxu0
  %v121 = vadd.f32 0.0, %v120
  %v122 = vpop.f32.mrf.mxu0
  %v123 = vadd.f32 0.0, %v122
  %124 = vdwg.mxu0
  %v125 = vadd.f32 %v22, %v116
  %v126 = vadd.f32 %v23, %v118
  %v127 = vadd.f32 %v24, %v121
  %v128 = vadd.f32 %v25, %v123
  %129 = vst [vmem:[#allocation2] sm:$0xff] %v125
  %130 = vst [vmem:[#allocation2 + $0x8] sm:$0xff] %v126
  %131 = vst [vmem:[#allocation2 + $0x10] sm:$0xff] %v127
  %132 = vst [vmem:[#allocation2 + $0x18] sm:$0xff] %v128
  // Predicated region
  $region14: #{_lambda_.7} parent=0 // pred_check
    %p133 = pneg %p14
  $region15: #{_lambda_.7} parent=0 // pred_check_branch
    %135 = sbr.rel (%p133) target = $region17
  $region16: #{_lambda_.7} parent=0 // pred_region
    %v136 = vld [vmem:[#allocation2] sm:$0xff]
    %v137 = vld [vmem:[#allocation2 + $0x8] sm:$0xff]
    %v138 = vld [vmem:[#allocation2 + $0x10] sm:$0xff]
    %v139 = vld [vmem:[#allocation2 + $0x18] sm:$0xff]
    %v140 = vpack.c.bf16 %v136, %v136
    %v141 = vpack.c.bf16 %v137, %v137
    %v142 = vpack.c.bf16 %v138, %v138
    %v143 = vpack.c.bf16 %v139, %v139
    %144 = vst [vmem:[%s2] sm:$0xf] %v140
    %145 = vst [vmem:[%s2 + $0x4] sm:$0xf] %v141
    %146 = vst [vmem:[%s2 + $0x8] sm:$0xf] %v142
    %147 = vst [vmem:[%s2 + $0xc] sm:$0xf] %v143
    %v148 = vadd.f32 %v136, %v137
    %v149 = vadd.f32 %v148, %v138
    %v150 = vadd.f32 %v149, %v139
    %v151 = vrot.slane %v150, 4
    %v152 = vadd.f32 %v150, %v151
    %v153 = vrot.slane %v152, 2
    %v154 = vadd.f32 %v152, %v153
    %v155 = vrot.slane %v154, 1
    %v156 = vadd.f32 %v154, %v155
    %157 = vst [vmem:[%s3] sm:$0x1] %v156
    %v158 = vmul.f32 %v136, %v136
    %v159 = vmul.f32 %v137, %v137
    %v160 = vmul.f32 %v138, %v138
    %v161 = vmul.f32 %v139, %v139
    %v162 = vadd.f32 %v158, %v159
    %v163 = vadd.f32 %v162, %v160
    %v164 = vadd.f32 %v163, %v161
    %v165 = vrot.slane %v164, 4
    %v166 = vadd.f32 %v164, %v165
    %v167 = vrot.slane %v166, 2
    %v168 = vadd.f32 %v166, %v167
    %v169 = vrot.slane %v168, 1
    %v170 = vadd.f32 %v168, %v169
    %171 = vst [vmem:[%s4] sm:$0x1] %v170
  $region17: #{_lambda_.7} parent=0 // pred_fallthru
    _
  // Predicated region
  $region18: #{_lambda_.7} parent=0 // pred_check
    _
  $region19: #{_lambda_.7} parent=0 // pred_check_branch
    %173 = sbr.rel (0) target = $region21
  $region20: #{_lambda_.7} parent=0 // pred_region
    _
  $region21: #{_lambda_.7} parent=0 // pred_fallthru
    _
  // Predicated region
  $region22: #{_lambda_.7} parent=0 // pred_check
    _
  $region23: #{_lambda_.7} parent=0 // pred_check_branch
    %175 = sbr.rel (0) target = $region25
  $region24: #{_lambda_.7} parent=0 // pred_region
    _
  $region25: #{_lambda_.7} parent=0 // pred_fallthru
    _
  // Predicated region
  $region26: #{_lambda_.7} parent=0 // pred_check
    _
  $region27: #{_lambda_.7} parent=0 // pred_check_branch
    %177 = sbr.rel (0) target = $region29
  $region28: #{_lambda_.7} parent=0 // pred_region
    _
  $region29: #{_lambda_.7} parent=0 // pred_fallthru
    _
  // Predicated region
  $region30: #{_lambda_.7} parent=0 // pred_check
    _
  $region31: #{_lambda_.7} parent=0 // pred_check_branch
    %179 = sbr.rel (0) target = $region33
  $region32: #{_lambda_.7} parent=0 // pred_region
    _
  $region33: #{_lambda_.7} parent=0 // pred_fallthru
    _
  // Predicated region
  $region34: #{_lambda_.7} parent=0 // pred_check
    _
  $region35: #{_lambda_.7} parent=0 // pred_check_branch
    %181 = sbr.rel (0) target = $region37
  $region36: #{_lambda_.7} parent=0 // pred_region
    _
  $region37: #{_lambda_.7} parent=0 // pred_fallthru
    _
  // Predicated region
  $region38: #{_lambda_.7} parent=0 // pred_check
    _
  $region39: #{_lambda_.7} parent=0 // pred_check_branch
    %183 = sbr.rel (0) target = $region41
  $region40: #{_lambda_.7} parent=0 // pred_region
    _
  $region41: #{_lambda_.7} parent=0 // pred_fallthru
    _

// kernel: _lambda_.8
$region0: #{_lambda_.8}
  #allocation0 [shape = 'u32[]', space=smem, size = 0x4, offset = 0x4, fixed_abs, tag = 'smem constant byte address 0x4 - core index']
  #allocation1 [shape = 'u32[72,128]{1,0:T(1,128)}', space=vmem, size = 0x9000, scoped, tag = 'internal scratch']
  #allocation2 [shape = 'f32[8,128]{1,0:T(8,128)}', space=vmem, size = 0x1000, scoped, tag = 'scratch operand']
  %s0 = inlined_call_operand.vmem [shape: bf16[8,256], index: 0, kind: input, shape index: {}]
  %s1 = inlined_call_operand.vmem [shape: bf16[256,128], index: 1, kind: input, shape index: {}]
  %s2 = inlined_call_operand.vmem [shape: bf16[8,128], index: 2, kind: output, shape index: {}]
  %s3 = sld [smem:[#allocation0]]
  $region26: #{_lambda_.8} parent=0
    _
  %s5 = ssub.s32 1, %s3
  %s6 = scalar_select 0, %s5, %s3
  // Predicated region
  $region2: #{_lambda_.8} parent=0 // pred_check
    _
  $region3: #{_lambda_.8} parent=0 // pred_check_branch
    %8 = sbr.rel (0) target = $region5
  $region4: #{_lambda_.8} parent=0 // pred_region
    _
  $region5: #{_lambda_.8} parent=0 // pred_fallthru
    _
  // Predicated region
  $region6: #{_lambda_.8} parent=0 // pred_check
    _
  $region7: #{_lambda_.8} parent=0 // pred_check_branch
    %10 = sbr.rel (0) target = $region9
  $region8: #{_lambda_.8} parent=0 // pred_region
    _
  $region9: #{_lambda_.8} parent=0 // pred_fallthru
    _
  %p11 = scmp.eq.s32.totalorder 0, 0
  // Predicated region
  $region10: #{_lambda_.8} parent=0 // pred_check
    %p12 = pneg %p11
  $region11: #{_lambda_.8} parent=0 // pred_check_branch
    %14 = sbr.rel (%p12) target = $region13
  $region12: #{_lambda_.8} parent=0 // pred_region
    %15 = vst [vmem:[#allocation2] sm:$0xff] 0.0
  $region13: #{_lambda_.8} parent=0 // pred_fallthru
    _
  %v16 = vld [vmem:[#allocation2] sm:$0xff]
  %v17 = vld [vmem:[%s0] sm:$0xff]
  %v18 = vld [vmem:[%s1] sm:$0xf]
  %v19 = vld [vmem:[%s1 + $0x4] sm:$0xf]
  %v20 = vld [vmem:[%s1 + $0x8] sm:$0xf]
  %v21 = vld [vmem:[%s1 + $0xc] sm:$0xf]
  %v22 = vld [vmem:[%s1 + $0x10] sm:$0xf]
  %v23 = vld [vmem:[%s1 + $0x14] sm:$0xf]
  %v24 = vld [vmem:[%s1 + $0x18] sm:$0xf]
  %v25 = vld [vmem:[%s1 + $0x1c] sm:$0xf]
  %v26 = vld [vmem:[%s1 + $0x20] sm:$0xf]
  %v27 = vld [vmem:[%s1 + $0x24] sm:$0xf]
  %v28 = vld [vmem:[%s1 + $0x28] sm:$0xf]
  %v29 = vld [vmem:[%s1 + $0x2c] sm:$0xf]
  %v30 = vld [vmem:[%s1 + $0x30] sm:$0xf]
  %v31 = vld [vmem:[%s1 + $0x34] sm:$0xf]
  %v32 = vld [vmem:[%s1 + $0x38] sm:$0xf]
  %v33 = vld [vmem:[%s1 + $0x3c] sm:$0xf]
  %v34 = vld [vmem:[%s1 + $0x40] sm:$0xf]
  %v35 = vld [vmem:[%s1 + $0x44] sm:$0xf]
  %v36 = vld [vmem:[%s1 + $0x48] sm:$0xf]
  %v37 = vld [vmem:[%s1 + $0x4c] sm:$0xf]
  %v38 = vld [vmem:[%s1 + $0x50] sm:$0xf]
  %v39 = vld [vmem:[%s1 + $0x54] sm:$0xf]
  %v40 = vld [vmem:[%s1 + $0x58] sm:$0xf]
  %v41 = vld [vmem:[%s1 + $0x5c] sm:$0xf]
  %v42 = vld [vmem:[%s1 + $0x60] sm:$0xf]
  %v43 = vld [vmem:[%s1 + $0x64] sm:$0xf]
  %v44 = vld [vmem:[%s1 + $0x68] sm:$0xf]
  %v45 = vld [vmem:[%s1 + $0x6c] sm:$0xf]
  %v46 = vld [vmem:[%s1 + $0x70] sm:$0xf]
  %v47 = vld [vmem:[%s1 + $0x74] sm:$0xf]
  %v48 = vld [vmem:[%s1 + $0x78] sm:$0xf]
  %v49 = vld [vmem:[%s1 + $0x7c] sm:$0xf]
  %v51 = vunpack.c.l.b16 %v17
  %v52 = vunpack.c.h.b16 %v17
  %v53 = vpack.c.b16 %v51, %v51
  %v54 = vpack.c.b16 %v52, %v52
  %v89 = vunpack.c.l.b16 %v18
  %v90 = vunpack.c.l.b16 %v19
  %v91 = vunpack.c.l.b16 %v20
  %v92 = vunpack.c.l.b16 %v21
  %v93 = vunpack.c.l.b16 %v22
  %v94 = vunpack.c.l.b16 %v23
  %v95 = vunpack.c.l.b16 %v24
  %v96 = vunpack.c.l.b16 %v25
  %v97 = vunpack.c.l.b16 %v26
  %v98 = vunpack.c.l.b16 %v27
  %v99 = vunpack.c.l.b16 %v28
  %v100 = vunpack.c.l.b16 %v29
  %v101 = vunpack.c.l.b16 %v30
  %v102 = vunpack.c.l.b16 %v31
  %v103 = vunpack.c.l.b16 %v32
  %v104 = vunpack.c.l.b16 %v33
  %v105 = vunpack.c.l.b16 %v34
  %v106 = vunpack.c.l.b16 %v35
  %v107 = vunpack.c.l.b16 %v36
  %v108 = vunpack.c.l.b16 %v37
  %v109 = vunpack.c.l.b16 %v38
  %v110 = vunpack.c.l.b16 %v39
  %v111 = vunpack.c.l.b16 %v40
  %v112 = vunpack.c.l.b16 %v41
  %v113 = vunpack.c.l.b16 %v42
  %v114 = vunpack.c.l.b16 %v43
  %v115 = vunpack.c.l.b16 %v44
  %v116 = vunpack.c.l.b16 %v45
  %v117 = vunpack.c.l.b16 %v46
  %v118 = vunpack.c.l.b16 %v47
  %v119 = vunpack.c.l.b16 %v48
  %v120 = vunpack.c.l.b16 %v49
  %v121 = vpack.c.b16 %v90, %v89
  %v122 = vpack.c.b16 %v92, %v91
  %v123 = vpack.c.b16 %v94, %v93
  %v124 = vpack.c.b16 %v96, %v95
  %v125 = vpack.c.b16 %v98, %v97
  %v126 = vpack.c.b16 %v100, %v99
  %v127 = vpack.c.b16 %v102, %v101
  %v128 = vpack.c.b16 %v104, %v103
  %v129 = vpack.c.b16 %v106, %v105
  %v130 = vpack.c.b16 %v108, %v107
  %v131 = vpack.c.b16 %v110, %v109
  %v132 = vpack.c.b16 %v112, %v111
  %v133 = vpack.c.b16 %v114, %v113
  %v134 = vpack.c.b16 %v116, %v115
  %v135 = vpack.c.b16 %v118, %v117
  %v136 = vpack.c.b16 %v120, %v119
  %153 = vmatpush.bf16.msra.mxu0 %v128
  %154 = vmatpush.bf16.msra.mxu0 %v127
  %155 = vmatpush.bf16.msra.mxu0 %v126
  %156 = vmatpush.bf16.msra.mxu0 %v125
  %157 = vmatpush.bf16.msra.mxu0 %v124
  %158 = vmatpush.bf16.msra.mxu0 %v123
  %159 = vmatpush.bf16.msra.mxu0 %v122
  %160 = vmatpush.bf16.msra.mxu0 %v121
  %161 = vmatmul.bf16.gmra.mxu0 %v53
  %v162 = vpop.f32.mrf.mxu0
  %v163 = vadd.f32 0.0, %v162
  %v164 = vpop.f32.mrf.mxu0
  %165 = vdwg.mxu0
  %166 = vmatpush.bf16.msra.mxu0 %v136
  %167 = vmatpush.bf16.msra.mxu0 %v135
  %168 = vmatpush.bf16.msra.mxu0 %v134
  %169 = vmatpush.bf16.msra.mxu0 %v133
  %170 = vmatpush.bf16.msra.mxu0 %v132
  %171 = vmatpush.bf16.msra.mxu0 %v131
  %172 = vmatpush.bf16.msra.mxu0 %v130
  %173 = vmatpush.bf16.msra.mxu0 %v129
  %174 = vmatmul.bf16.gmra.mxu0 %v54
  %v175 = vpop.f32.mrf.mxu0
  %v176 = vadd.f32 %v163, %v175
  %v177 = vpop.f32.mrf.mxu0
  %178 = vdwg.mxu0
  %v179 = vadd.f32 %v16, %v176
  %180 = vst [vmem:[#allocation2] sm:$0xff] %v179
  // Predicated region
  $region14: #{_lambda_.8} parent=0 // pred_check
    %p181 = pneg %p11
  $region15: #{_lambda_.8} parent=0 // pred_check_branch
    %183 = sbr.rel (%p181) target = $region17
  $region16: #{_lambda_.8} parent=0 // pred_region
    %v184 = vld [vmem:[#allocation2] sm:$0xff]
    %v185 = vpack.c.bf16 %v184, %v184
    %186 = vst [vmem:[%s2] sm:$0xf] %v185
  $region17: #{_lambda_.8} parent=0 // pred_fallthru
    _
  // Predicated region
  $region18: #{_lambda_.8} parent=0 // pred_check
    _
  $region19: #{_lambda_.8} parent=0 // pred_check_branch
    %188 = sbr.rel (0) target = $region21
  $region20: #{_lambda_.8} parent=0 // pred_region
    _
  $region21: #{_lambda_.8} parent=0 // pred_fallthru
    _
  // Predicated region
  $region22: #{_lambda_.8} parent=0 // pred_check
    _
  $region23: #{_lambda_.8} parent=0 // pred_check_branch
    %190 = sbr.rel (0) target = $region25
  $region24: #{_lambda_.8} parent=0 // pred_region
    _
  $region25: #{_lambda_.8} parent=0 // pred_fallthru
    _

// kernel: _lambda_.9
$region0: #{_lambda_.9}
  #allocation0 [shape = 'u32[]', space=smem, size = 0x4, offset = 0x4, fixed_abs, tag = 'smem constant byte address 0x4 - core index']
  #allocation1 [shape = 'u32[72,128]{1,0:T(1,128)}', space=vmem, size = 0x9000, scoped, tag = 'internal scratch']
  #allocation2 [shape = 'f32[8,128]{1,0:T(8,128)}', space=vmem, size = 0x1000, scoped, tag = 'scratch operand']
  %s0 = inlined_call_operand.vmem [shape: bf16[8,256], index: 0, kind: input, shape index: {}]
  %s1 = inlined_call_operand.vmem [shape: bf16[256,128], index: 1, kind: input, shape index: {}]
  %s2 = inlined_call_operand.vmem [shape: bf16[8,128], index: 2, kind: output, shape index: {0}]
  %s3 = inlined_call_operand.vmem [shape: f32[1,1,128], index: 3, kind: output, shape index: {1}]
  %s4 = inlined_call_operand.vmem [shape: f32[1,1,128], index: 4, kind: output, shape index: {2}]
  %5 = xla_tuple %s2, %s3, %s4
  %s6 = sld [smem:[#allocation0]]
  $region42: #{_lambda_.9} parent=0
    _
  %s8 = ssub.s32 1, %s6
  %s9 = scalar_select 0, %s8, %s6
  // Predicated region
  $region2: #{_lambda_.9} parent=0 // pred_check
    _
  $region3: #{_lambda_.9} parent=0 // pred_check_branch
    %11 = sbr.rel (0) target = $region5
  $region4: #{_lambda_.9} parent=0 // pred_region
    _
  $region5: #{_lambda_.9} parent=0 // pred_fallthru
    _
  // Predicated region
  $region6: #{_lambda_.9} parent=0 // pred_check
    _
  $region7: #{_lambda_.9} parent=0 // pred_check_branch
    %13 = sbr.rel (0) target = $region9
  $region8: #{_lambda_.9} parent=0 // pred_region
    _
  $region9: #{_lambda_.9} parent=0 // pred_fallthru
    _
  %p14 = scmp.eq.s32.totalorder 0, 0
  // Predicated region
  $region10: #{_lambda_.9} parent=0 // pred_check
    %p15 = pneg %p14
  $region11: #{_lambda_.9} parent=0 // pred_check_branch
    %17 = sbr.rel (%p15) target = $region13
  $region12: #{_lambda_.9} parent=0 // pred_region
    %18 = vst [vmem:[#allocation2] sm:$0xff] 0.0
  $region13: #{_lambda_.9} parent=0 // pred_fallthru
    _
  %v19 = vld [vmem:[#allocation2] sm:$0xff]
  %v20 = vld [vmem:[%s0] sm:$0xff]
  %v21 = vld [vmem:[%s1] sm:$0xf]
  %v22 = vld [vmem:[%s1 + $0x4] sm:$0xf]
  %v23 = vld [vmem:[%s1 + $0x8] sm:$0xf]
  %v24 = vld [vmem:[%s1 + $0xc] sm:$0xf]
  %v25 = vld [vmem:[%s1 + $0x10] sm:$0xf]
  %v26 = vld [vmem:[%s1 + $0x14] sm:$0xf]
  %v27 = vld [vmem:[%s1 + $0x18] sm:$0xf]
  %v28 = vld [vmem:[%s1 + $0x1c] sm:$0xf]
  %v29 = vld [vmem:[%s1 + $0x20] sm:$0xf]
  %v30 = vld [vmem:[%s1 + $0x24] sm:$0xf]
  %v31 = vld [vmem:[%s1 + $0x28] sm:$0xf]
  %v32 = vld [vmem:[%s1 + $0x2c] sm:$0xf]
  %v33 = vld [vmem:[%s1 + $0x30] sm:$0xf]
  %v34 = vld [vmem:[%s1 + $0x34] sm:$0xf]
  %v35 = vld [vmem:[%s1 + $0x38] sm:$0xf]
  %v36 = vld [vmem:[%s1 + $0x3c] sm:$0xf]
  %v37 = vld [vmem:[%s1 + $0x40] sm:$0xf]
  %v38 = vld [vmem:[%s1 + $0x44] sm:$0xf]
  %v39 = vld [vmem:[%s1 + $0x48] sm:$0xf]
  %v40 = vld [vmem:[%s1 + $0x4c] sm:$0xf]
  %v41 = vld [vmem:[%s1 + $0x50] sm:$0xf]
  %v42 = vld [vmem:[%s1 + $0x54] sm:$0xf]
  %v43 = vld [vmem:[%s1 + $0x58] sm:$0xf]
  %v44 = vld [vmem:[%s1 + $0x5c] sm:$0xf]
  %v45 = vld [vmem:[%s1 + $0x60] sm:$0xf]
  %v46 = vld [vmem:[%s1 + $0x64] sm:$0xf]
  %v47 = vld [vmem:[%s1 + $0x68] sm:$0xf]
  %v48 = vld [vmem:[%s1 + $0x6c] sm:$0xf]
  %v49 = vld [vmem:[%s1 + $0x70] sm:$0xf]
  %v50 = vld [vmem:[%s1 + $0x74] sm:$0xf]
  %v51 = vld [vmem:[%s1 + $0x78] sm:$0xf]
  %v52 = vld [vmem:[%s1 + $0x7c] sm:$0xf]
  %v54 = vunpack.c.l.b16 %v20
  %v55 = vunpack.c.h.b16 %v20
  %v56 = vpack.c.b16 %v54, %v54
  %v57 = vpack.c.b16 %v55, %v55
  %v92 = vunpack.c.l.b16 %v21
  %v93 = vunpack.c.l.b16 %v22
  %v94 = vunpack.c.l.b16 %v23
  %v95 = vunpack.c.l.b16 %v24
  %v96 = vunpack.c.l.b16 %v25
  %v97 = vunpack.c.l.b16 %v26
  %v98 = vunpack.c.l.b16 %v27
  %v99 = vunpack.c.l.b16 %v28
  %v100 = vunpack.c.l.b16 %v29
  %v101 = vunpack.c.l.b16 %v30
  %v102 = vunpack.c.l.b16 %v31
  %v103 = vunpack.c.l.b16 %v32
  %v104 = vunpack.c.l.b16 %v33
  %v105 = vunpack.c.l.b16 %v34
  %v106 = vunpack.c.l.b16 %v35
  %v107 = vunpack.c.l.b16 %v36
  %v108 = vunpack.c.l.b16 %v37
  %v109 = vunpack.c.l.b16 %v38
  %v110 = vunpack.c.l.b16 %v39
  %v111 = vunpack.c.l.b16 %v40
  %v112 = vunpack.c.l.b16 %v41
  %v113 = vunpack.c.l.b16 %v42
  %v114 = vunpack.c.l.b16 %v43
  %v115 = vunpack.c.l.b16 %v44
  %v116 = vunpack.c.l.b16 %v45
  %v117 = vunpack.c.l.b16 %v46
  %v118 = vunpack.c.l.b16 %v47
  %v119 = vunpack.c.l.b16 %v48
  %v120 = vunpack.c.l.b16 %v49
  %v121 = vunpack.c.l.b16 %v50
  %v122 = vunpack.c.l.b16 %v51
  %v123 = vunpack.c.l.b16 %v52
  %v124 = vpack.c.b16 %v93, %v92
  %v125 = vpack.c.b16 %v95, %v94
  %v126 = vpack.c.b16 %v97, %v96
  %v127 = vpack.c.b16 %v99, %v98
  %v128 = vpack.c.b16 %v101, %v100
  %v129 = vpack.c.b16 %v103, %v102
  %v130 = vpack.c.b16 %v105, %v104
  %v131 = vpack.c.b16 %v107, %v106
  %v132 = vpack.c.b16 %v109, %v108
  %v133 = vpack.c.b16 %v111, %v110
  %v134 = vpack.c.b16 %v113, %v112
  %v135 = vpack.c.b16 %v115, %v114
  %v136 = vpack.c.b16 %v117, %v116
  %v137 = vpack.c.b16 %v119, %v118
  %v138 = vpack.c.b16 %v121, %v120
  %v139 = vpack.c.b16 %v123, %v122
  %156 = vmatpush.bf16.msra.mxu0 %v131
  %157 = vmatpush.bf16.msra.mxu0 %v130
  %158 = vmatpush.bf16.msra.mxu0 %v129
  %159 = vmatpush.bf16.msra.mxu0 %v128
  %160 = vmatpush.bf16.msra.mxu0 %v127
  %161 = vmatpush.bf16.msra.mxu0 %v126
  %162 = vmatpush.bf16.msra.mxu0 %v125
  %163 = vmatpush.bf16.msra.mxu0 %v124
  %164 = vmatmul.bf16.gmra.mxu0 %v56
  %v165 = vpop.f32.mrf.mxu0
  %v166 = vadd.f32 0.0, %v165
  %v167 = vpop.f32.mrf.mxu0
  %168 = vdwg.mxu0
  %169 = vmatpush.bf16.msra.mxu0 %v139
  %170 = vmatpush.bf16.msra.mxu0 %v138
  %171 = vmatpush.bf16.msra.mxu0 %v137
  %172 = vmatpush.bf16.msra.mxu0 %v136
  %173 = vmatpush.bf16.msra.mxu0 %v135
  %174 = vmatpush.bf16.msra.mxu0 %v134
  %175 = vmatpush.bf16.msra.mxu0 %v133
  %176 = vmatpush.bf16.msra.mxu0 %v132
  %177 = vmatmul.bf16.gmra.mxu0 %v57
  %v178 = vpop.f32.mrf.mxu0
  %v179 = vadd.f32 %v166, %v178
  %v180 = vpop.f32.mrf.mxu0
  %181 = vdwg.mxu0
  %v182 = vadd.f32 %v19, %v179
  %183 = vst [vmem:[#allocation2] sm:$0xff] %v182
  // Predicated region
  $region14: #{_lambda_.9} parent=0 // pred_check
    %p184 = pneg %p14
  $region15: #{_lambda_.9} parent=0 // pred_check_branch
    %186 = sbr.rel (%p184) target = $region17
  $region16: #{_lambda_.9} parent=0 // pred_region
    %v187 = vld [vmem:[#allocation2] sm:$0xff]
    %v188 = vpack.c.bf16 %v187, %v187
    %189 = vst [vmem:[%s2] sm:$0xf] %v188
    %v190 = vrot.slane %v187, 4
    %v191 = vadd.f32 %v187, %v190
    %v192 = vrot.slane %v191, 2
    %v193 = vadd.f32 %v191, %v192
    %v194 = vrot.slane %v193, 1
    %v195 = vadd.f32 %v193, %v194
    %196 = vst [vmem:[%s3] sm:$0x1] %v195
    %v197 = vmul.f32 %v187, %v187
    %v198 = vrot.slane %v197, 4
    %v199 = vadd.f32 %v197, %v198
    %v200 = vrot.slane %v199, 2
    %v201 = vadd.f32 %v199, %v200
    %v202 = vrot.slane %v201, 1
    %v203 = vadd.f32 %v201, %v202
    %204 = vst [vmem:[%s4] sm:$0x1] %v203
  $region17: #{_lambda_.9} parent=0 // pred_fallthru
    _
  // Predicated region
  $region18: #{_lambda_.9} parent=0 // pred_check
    _
  $region19: #{_lambda_.9} parent=0 // pred_check_branch
    %206 = sbr.rel (0) target = $region21
  $region20: #{_lambda_.9} parent=0 // pred_region
    _
  $region21: #{_lambda_.9} parent=0 // pred_fallthru
    _
  // Predicated region
  $region22: #{_lambda_.9} parent=0 // pred_check
    _
  $region23: #{_lambda_.9} parent=0 // pred_check_branch
    %208 = sbr.rel (0) target = $region25
  $region24: #{_lambda_.9} parent=0 // pred_region
    _
  $region25: #{_lambda_.9} parent=0 // pred_fallthru
    _
  // Predicated region
  $region26: #{_lambda_.9} parent=0 // pred_check
    _
  $region27: #{_lambda_.9} parent=0 // pred_check_branch
    %210 = sbr.rel (0) target = $region29
  $region28: #{_lambda_.9} parent=0 // pred_region
    _
  $region29: #{_lambda_.9} parent=0 // pred_fallthru
    _
  // Predicated region
  $region30: #{_lambda_.9} parent=0 // pred_check
    _
  $region31: #{_lambda_.9} parent=0 // pred_check_branch
    %212 = sbr.rel (0) target = $region33
  $region32: #{_lambda_.9} parent=0 // pred_region
    _
  $region33: #{_lambda_.9} parent=0 // pred_fallthru
    _
  // Predicated region
  $region34: #{_lambda_.9} parent=0 // pred_check
    _
  $region35: #{_lambda_.9} parent=0 // pred_check_branch
    %214 = sbr.rel (0) target = $region37
  $region36: #{_lambda_.9} parent=0 // pred_region
    _
  $region37: #{_lambda_.9} parent=0 // pred_fallthru
    _
  // Predicated region
  $region38: #{_lambda_.9} parent=0 // pred_check
    _
  $region39: #{_lambda_.9} parent=0 // pred_check_branch
    %216 = sbr.rel (0) target = $region41
  $region40: #{_lambda_.9} parent=0 // pred_region
    _
  $region41: #{_lambda_.9} parent=0 // pred_fallthru
    _

// kernel: _lambda_.10
$region0: #{_lambda_.10}
  #allocation0 [shape = 'u32[]', space=smem, size = 0x4, offset = 0x4, fixed_abs, tag = 'smem constant byte address 0x4 - core index']
  #allocation1 [shape = 'u32[72,128]{1,0:T(1,128)}', space=vmem, size = 0x9000, scoped, tag = 'internal scratch']
  #allocation2 [shape = 'f32[32,128]{1,0:T(8,128)}', space=vmem, size = 0x4000, scoped, tag = 'scratch operand']
  %s0 = inlined_call_operand.vmem [shape: bf16[32,384], index: 0, kind: input, shape index: {}]
  %s1 = inlined_call_operand.vmem [shape: bf16[384,128], index: 1, kind: input, shape index: {}]
  %s2 = inlined_call_operand.vmem [shape: bf16[32,128], index: 2, kind: output, shape index: {0}]
  %s3 = inlined_call_operand.vmem [shape: f32[1,1,128], index: 3, kind: output, shape index: {1}]
  %s4 = inlined_call_operand.vmem [shape: f32[1,1,128], index: 4, kind: output, shape index: {2}]
  %5 = xla_tuple %s2, %s3, %s4
  %s6 = sld [smem:[#allocation0]]
  $region42: #{_lambda_.10} parent=0
    _
  %s8 = ssub.s32 1, %s6
  %s9 = scalar_select 0, %s8, %s6
  // Predicated region
  $region2: #{_lambda_.10} parent=0 // pred_check
    _
  $region3: #{_lambda_.10} parent=0 // pred_check_branch
    %11 = sbr.rel (0) target = $region5
  $region4: #{_lambda_.10} parent=0 // pred_region
    _
  $region5: #{_lambda_.10} parent=0 // pred_fallthru
    _
  // Predicated region
  $region6: #{_lambda_.10} parent=0 // pred_check
    _
  $region7: #{_lambda_.10} parent=0 // pred_check_branch
    %13 = sbr.rel (0) target = $region9
  $region8: #{_lambda_.10} parent=0 // pred_region
    _
  $region9: #{_lambda_.10} parent=0 // pred_fallthru
    _
  %p14 = scmp.eq.s32.totalorder 0, 0
  // Predicated region
  $region10: #{_lambda_.10} parent=0 // pred_check
    %p15 = pneg %p14
  $region11: #{_lambda_.10} parent=0 // pred_check_branch
    %17 = sbr.rel (%p15) target = $region13
  $region12: #{_lambda_.10} parent=0 // pred_region
    %18 = vst [vmem:[#allocation2] sm:$0xff] 0.0
    %19 = vst [vmem:[#allocation2 + $0x8] sm:$0xff] 0.0
    %20 = vst [vmem:[#allocation2 + $0x10] sm:$0xff] 0.0
    %21 = vst [vmem:[#allocation2 + $0x18] sm:$0xff] 0.0
  $region13: #{_lambda_.10} parent=0 // pred_fallthru
    _
  %v22 = vld [vmem:[#allocation2] sm:$0xff]
  %v23 = vld [vmem:[#allocation2 + $0x8] sm:$0xff]
  %v24 = vld [vmem:[#allocation2 + $0x10] sm:$0xff]
  %v25 = vld [vmem:[#allocation2 + $0x18] sm:$0xff]
  %v26 = vld [vmem:[%s0] sm:$0xff]
  %v27 = vld [vmem:[%s0 + $0x8] sm:$0xf]
  %v28 = vld [vmem:[%s0 + $0xc] sm:$0xff]
  %v29 = vld [vmem:[%s0 + $0x14] sm:$0xf]
  %v30 = vld [vmem:[%s0 + $0x18] sm:$0xff]
  %v31 = vld [vmem:[%s0 + $0x20] sm:$0xf]
  %v32 = vld [vmem:[%s0 + $0x24] sm:$0xff]
  %v33 = vld [vmem:[%s0 + $0x2c] sm:$0xf]
  %v34 = vld [vmem:[%s1] sm:$0xf]
  %v35 = vld [vmem:[%s1 + $0x4] sm:$0xf]
  %v36 = vld [vmem:[%s1 + $0x8] sm:$0xf]
  %v37 = vld [vmem:[%s1 + $0xc] sm:$0xf]
  %v38 = vld [vmem:[%s1 + $0x10] sm:$0xf]
  %v39 = vld [vmem:[%s1 + $0x14] sm:$0xf]
  %v40 = vld [vmem:[%s1 + $0x18] sm:$0xf]
  %v41 = vld [vmem:[%s1 + $0x1c] sm:$0xf]
  %v42 = vld [vmem:[%s1 + $0x20] sm:$0xf]
  %v43 = vld [vmem:[%s1 + $0x24] sm:$0xf]
  %v44 = vld [vmem:[%s1 + $0x28] sm:$0xf]
  %v45 = vld [vmem:[%s1 + $0x2c] sm:$0xf]
  %v46 = vld [vmem:[%s1 + $0x30] sm:$0xf]
  %v47 = vld [vmem:[%s1 + $0x34] sm:$0xf]
  %v48 = vld [vmem:[%s1 + $0x38] sm:$0xf]
  %v49 = vld [vmem:[%s1 + $0x3c] sm:$0xf]
  %v50 = vld [vmem:[%s1 + $0x40] sm:$0xf]
  %v51 = vld [vmem:[%s1 + $0x44] sm:$0xf]
  %v52 = vld [vmem:[%s1 + $0x48] sm:$0xf]
  %v53 = vld [vmem:[%s1 + $0x4c] sm:$0xf]
  %v54 = vld [vmem:[%s1 + $0x50] sm:$0xf]
  %v55 = vld [vmem:[%s1 + $0x54] sm:$0xf]
  %v56 = vld [vmem:[%s1 + $0x58] sm:$0xf]
  %v57 = vld [vmem:[%s1 + $0x5c] sm:$0xf]
  %v58 = vld [vmem:[%s1 + $0x60] sm:$0xf]
  %v59 = vld [vmem:[%s1 + $0x64] sm:$0xf]
  %v60 = vld [vmem:[%s1 + $0x68] sm:$0xf]
  %v61 = vld [vmem:[%s1 + $0x6c] sm:$0xf]
  %v62 = vld [vmem:[%s1 + $0x70] sm:$0xf]
  %v63 = vld [vmem:[%s1 + $0x74] sm:$0xf]
  %v64 = vld [vmem:[%s1 + $0x78] sm:$0xf]
  %v65 = vld [vmem:[%s1 + $0x7c] sm:$0xf]
  %v66 = vld [vmem:[%s1 + $0x80] sm:$0xf]
  %v67 = vld [vmem:[%s1 + $0x84] sm:$0xf]
  %v68 = vld [vmem:[%s1 + $0x88] sm:$0xf]
  %v69 = vld [vmem:[%s1 + $0x8c] sm:$0xf]
  %v70 = vld [vmem:[%s1 + $0x90] sm:$0xf]
  %v71 = vld [vmem:[%s1 + $0x94] sm:$0xf]
  %v72 = vld [vmem:[%s1 + $0x98] sm:$0xf]
  %v73 = vld [vmem:[%s1 + $0x9c] sm:$0xf]
  %v74 = vld [vmem:[%s1 + $0xa0] sm:$0xf]
  %v75 = vld [vmem:[%s1 + $0xa4] sm:$0xf]
  %v76 = vld [vmem:[%s1 + $0xa8] sm:$0xf]
  %v77 = vld [vmem:[%s1 + $0xac] sm:$0xf]
  %v78 = vld [vmem:[%s1 + $0xb0] sm:$0xf]
  %v79 = vld [vmem:[%s1 + $0xb4] sm:$0xf]
  %v80 = vld [vmem:[%s1 + $0xb8] sm:$0xf]
  %v81 = vld [vmem:[%s1 + $0xbc] sm:$0xf]
  %v90 = vunpack.c.l.b16 %v26
  %v91 = vunpack.c.h.b16 %v26
  %v92 = vunpack.c.l.b16 %v27
  %v93 = vunpack.c.l.b16 %v28
  %v94 = vunpack.c.h.b16 %v28
  %v95 = vunpack.c.l.b16 %v29
  %v96 = vunpack.c.l.b16 %v30
  %v97 = vunpack.c.h.b16 %v30
  %v98 = vunpack.c.l.b16 %v31
  %v99 = vunpack.c.l.b16 %v32
  %v100 = vunpack.c.h.b16 %v32
  %v101 = vunpack.c.l.b16 %v33
  %v102 = vpack.c.b16 %v93, %v90
  %v103 = vpack.c.b16 %v94, %v91
  %v104 = vpack.c.b16 %v95, %v92
  %v105 = vpack.c.b16 %v99, %v96
  %v106 = vpack.c.b16 %v100, %v97
  %v107 = vpack.c.b16 %v101, %v98
  %v162 = vunpack.c.l.b16 %v34
  %v163 = vunpack.c.l.b16 %v35
  %v164 = vunpack.c.l.b16 %v36
  %v165 = vunpack.c.l.b16 %v37
  %v166 = vunpack.c.l.b16 %v38
  %v167 = vunpack.c.l.b16 %v39
  %v168 = vunpack.c.l.b16 %v40
  %v169 = vunpack.c.l.b16 %v41
  %v170 = vunpack.c.l.b16 %v42
  %v171 = vunpack.c.l.b16 %v43
  %v172 = vunpack.c.l.b16 %v44
  %v173 = vunpack.c.l.b16 %v45
  %v174 = vunpack.c.l.b16 %v46
  %v175 = vunpack.c.l.b16 %v47
  %v176 = vunpack.c.l.b16 %v48
  %v177 = vunpack.c.l.b16 %v49
  %v178 = vunpack.c.l.b16 %v50
  %v179 = vunpack.c.l.b16 %v51
  %v180 = vunpack.c.l.b16 %v52
  %v181 = vunpack.c.l.b16 %v53
  %v182 = vunpack.c.l.b16 %v54
  %v183 = vunpack.c.l.b16 %v55
  %v184 = vunpack.c.l.b16 %v56
  %v185 = vunpack.c.l.b16 %v57
  %v186 = vunpack.c.l.b16 %v58
  %v187 = vunpack.c.l.b16 %v59
  %v188 = vunpack.c.l.b16 %v60
  %v189 = vunpack.c.l.b16 %v61
  %v190 = vunpack.c.l.b16 %v62
  %v191 = vunpack.c.l.b16 %v63
  %v192 = vunpack.c.l.b16 %v64
  %v193 = vunpack.c.l.b16 %v65
  %v194 = vunpack.c.l.b16 %v66
  %v195 = vunpack.c.l.b16 %v67
  %v196 = vunpack.c.l.b16 %v68
  %v197 = vunpack.c.l.b16 %v69
  %v198 = vunpack.c.l.b16 %v70
  %v199 = vunpack.c.l.b16 %v71
  %v200 = vunpack.c.l.b16 %v72
  %v201 = vunpack.c.l.b16 %v73
  %v202 = vunpack.c.l.b16 %v74
  %v203 = vunpack.c.l.b16 %v75
  %v204 = vunpack.c.l.b16 %v76
  %v205 = vunpack.c.l.b16 %v77
  %v206 = vunpack.c.l.b16 %v78
  %v207 = vunpack.c.l.b16 %v79
  %v208 = vunpack.c.l.b16 %v80
  %v209 = vunpack.c.l.b16 %v81
  %v210 = vpack.c.b16 %v163, %v162
  %v211 = vpack.c.b16 %v165, %v164
  %v212 = vpack.c.b16 %v167, %v166
  %v213 = vpack.c.b16 %v169, %v168
  %v214 = vpack.c.b16 %v171, %v170
  %v215 = vpack.c.b16 %v173, %v172
  %v216 = vpack.c.b16 %v175, %v174
  %v217 = vpack.c.b16 %v177, %v176
  %v218 = vpack.c.b16 %v179, %v178
  %v219 = vpack.c.b16 %v181, %v180
  %v220 = vpack.c.b16 %v183, %v182
  %v221 = vpack.c.b16 %v185, %v184
  %v222 = vpack.c.b16 %v187, %v186
  %v223 = vpack.c.b16 %v189, %v188
  %v224 = vpack.c.b16 %v191, %v190
  %v225 = vpack.c.b16 %v193, %v192
  %v226 = vpack.c.b16 %v195, %v194
  %v227 = vpack.c.b16 %v197, %v196
  %v228 = vpack.c.b16 %v199, %v198
  %v229 = vpack.c.b16 %v201, %v200
  %v230 = vpack.c.b16 %v203, %v202
  %v231 = vpack.c.b16 %v205, %v204
  %v232 = vpack.c.b16 %v207, %v206
  %v233 = vpack.c.b16 %v209, %v208
  %258 = vmatpush.bf16.msra.mxu0 %v217
  %259 = vmatpush.bf16.msra.mxu0 %v216
  %260 = vmatpush.bf16.msra.mxu0 %v215
  %261 = vmatpush.bf16.msra.mxu0 %v214
  %262 = vmatpush.bf16.msra.mxu0 %v213
  %263 = vmatpush.bf16.msra.mxu0 %v212
  %264 = vmatpush.bf16.msra.mxu0 %v211
  %265 = vmatpush.bf16.msra.mxu0 %v210
  %266 = vmatmul.bf16.gmra.mxu0 %v102
  %v267 = vpop.f32.mrf.mxu0
  %v268 = vadd.f32 0.0, %v267
  %v269 = vpop.f32.mrf.mxu0
  %v270 = vadd.f32 0.0, %v269
  %271 = vmatmul.bf16.gmra.mxu0 %v105
  %v272 = vpop.f32.mrf.mxu0
  %v273 = vadd.f32 0.0, %v272
  %v274 = vpop.f32.mrf.mxu0
  %v275 = vadd.f32 0.0, %v274
  %276 = vdwg.mxu0
  %277 = vmatpush.bf16.msra.mxu0 %v225
  %278 = vmatpush.bf16.msra.mxu0 %v224
  %279 = vmatpush.bf16.msra.mxu0 %v223
  %280 = vmatpush.bf16.msra.mxu0 %v222
  %281 = vmatpush.bf16.msra.mxu0 %v221
  %282 = vmatpush.bf16.msra.mxu0 %v220
  %283 = vmatpush.bf16.msra.mxu0 %v219
  %284 = vmatpush.bf16.msra.mxu0 %v218
  %285 = vmatmul.bf16.gmra.mxu0 %v103
  %v286 = vpop.f32.mrf.mxu0
  %v287 = vadd.f32 %v268, %v286
  %v288 = vpop.f32.mrf.mxu0
  %v289 = vadd.f32 %v270, %v288
  %290 = vmatmul.bf16.gmra.mxu0 %v106
  %v291 = vpop.f32.mrf.mxu0
  %v292 = vadd.f32 %v273, %v291
  %v293 = vpop.f32.mrf.mxu0
  %v294 = vadd.f32 %v275, %v293
  %295 = vdwg.mxu0
  %296 = vmatpush.bf16.msra.mxu0 %v233
  %297 = vmatpush.bf16.msra.mxu0 %v232
  %298 = vmatpush.bf16.msra.mxu0 %v231
  %299 = vmatpush.bf16.msra.mxu0 %v230
  %300 = vmatpush.bf16.msra.mxu0 %v229
  %301 = vmatpush.bf16.msra.mxu0 %v228
  %302 = vmatpush.bf16.msra.mxu0 %v227
  %303 = vmatpush.bf16.msra.mxu0 %v226
  %304 = vmatmul.bf16.gmra.mxu0 %v104
  %v305 = vpop.f32.mrf.mxu0
  %v306 = vadd.f32 %v287, %v305
  %v307 = vpop.f32.mrf.mxu0
  %v308 = vadd.f32 %v289, %v307
  %309 = vmatmul.bf16.gmra.mxu0 %v107
  %v310 = vpop.f32.mrf.mxu0
  %v311 = vadd.f32 %v292, %v310
  %v312 = vpop.f32.mrf.mxu0
  %v313 = vadd.f32 %v294, %v312
  %314 = vdwg.mxu0
  %v315 = vadd.f32 %v22, %v306
  %v316 = vadd.f32 %v23, %v308
  %v317 = vadd.f32 %v24, %v311
  %v318 = vadd.f32 %v25, %v313
  %319 = vst [vmem:[#allocation2] sm:$0xff] %v315
  %320 = vst [vmem:[#allocation2 + $0x8] sm:$0xff] %v316
  %321 = vst [vmem:[#allocation2 + $0x10] sm:$0xff] %v317
  %322 = vst [vmem:[#allocation2 + $0x18] sm:$0xff] %v318
  // Predicated region
  $region14: #{_lambda_.10} parent=0 // pred_check
    %p323 = pneg %p14
  $region15: #{_lambda_.10} parent=0 // pred_check_branch
    %325 = sbr.rel (%p323) target = $region17
  $region16: #{_lambda_.10} parent=0 // pred_region
    %v326 = vld [vmem:[#allocation2] sm:$0xff]
    %v327 = vld [vmem:[#allocation2 + $0x8] sm:$0xff]
    %v328 = vld [vmem:[#allocation2 + $0x10] sm:$0xff]
    %v329 = vld [vmem:[#allocation2 + $0x18] sm:$0xff]
    %v330 = vpack.c.bf16 %v326, %v326
    %v331 = vpack.c.bf16 %v327, %v327
    %v332 = vpack.c.bf16 %v328, %v328
    %v333 = vpack.c.bf16 %v329, %v329
    %334 = vst [vmem:[%s2] sm:$0xf] %v330
    %335 = vst [vmem:[%s2 + $0x4] sm:$0xf] %v331
    %336 = vst [vmem:[%s2 + $0x8] sm:$0xf] %v332
    %337 = vst [vmem:[%s2 + $0xc] sm:$0xf] %v333
    %v338 = vadd.f32 %v326, %v327
    %v339 = vadd.f32 %v338, %v328
    %v340 = vadd.f32 %v339, %v329
    %v341 = vrot.slane %v340, 4
    %v342 = vadd.f32 %v340, %v341
    %v343 = vrot.slane %v342, 2
    %v344 = vadd.f32 %v342, %v343
    %v345 = vrot.slane %v344, 1
    %v346 = vadd.f32 %v344, %v345
    %347 = vst [vmem:[%s3] sm:$0x1] %v346
    %v348 = vmul.f32 %v326, %v326
    %v349 = vmul.f32 %v327, %v327
    %v350 = vmul.f32 %v328, %v328
    %v351 = vmul.f32 %v329, %v329
    %v352 = vadd.f32 %v348, %v349
    %v353 = vadd.f32 %v352, %v350
    %v354 = vadd.f32 %v353, %v351
    %v355 = vrot.slane %v354, 4
    %v356 = vadd.f32 %v354, %v355
    %v357 = vrot.slane %v356, 2
    %v358 = vadd.f32 %v356, %v357
    %v359 = vrot.slane %v358, 1
    %v360 = vadd.f32 %v358, %v359
    %361 = vst [vmem:[%s4] sm:$0x1] %v360
  $region17: #{_lambda_.10} parent=0 // pred_fallthru
    _
  // Predicated region
  $region18: #{_lambda_.10} parent=0 // pred_check
    _
  $region19: #{_lambda_.10} parent=0 // pred_check_branch
    %363 = sbr.rel (0) target = $region21
  $region20: #{_lambda_.10} parent=0 // pred_region
    _
  $region21: #{_lambda_.10} parent=0 // pred_fallthru
    _
  // Predicated region
  $region22: #{_lambda_.10} parent=0 // pred_check
    _
  $region23: #{_lambda_.10} parent=0 // pred_check_branch
    %365 = sbr.rel (0) target = $region25
  $region24: #{_lambda_.10} parent=0 // pred_region
    _
  $region25: #{_lambda_.10} parent=0 // pred_fallthru
    _
  // Predicated region
  $region26: #{_lambda_.10} parent=0 // pred_check
    _
  $region27: #{_lambda_.10} parent=0 // pred_check_branch
    %367 = sbr.rel (0) target = $region29
  $region28: #{_lambda_.10} parent=0 // pred_region
    _
  $region29: #{_lambda_.10} parent=0 // pred_fallthru
    _
  // Predicated region
  $region30: #{_lambda_.10} parent=0 // pred_check
    _
  $region31: #{_lambda_.10} parent=0 // pred_check_branch
    %369 = sbr.rel (0) target = $region33
  $region32: #{_lambda_.10} parent=0 // pred_region
    _
  $region33: #{_lambda_.10} parent=0 // pred_fallthru
    _
  // Predicated region
  $region34: #{_lambda_.10} parent=0 // pred_check
    _
  $region35: #{_lambda_.10} parent=0 // pred_check_branch
    %371 = sbr.rel (0) target = $region37
  $region36: #{_lambda_.10} parent=0 // pred_region
    _
  $region37: #{_lambda_.10} parent=0 // pred_fallthru
    _
  // Predicated region
  $region38: #{_lambda_.10} parent=0 // pred_check
    _
  $region39: #{_lambda_.10} parent=0 // pred_check_branch
    %373 = sbr.rel (0) target = $region41
  $region40: #{_lambda_.10} parent=0 // pred_region
    _
  $region41: #{_lambda_.10} parent=0 // pred_fallthru
    _

// kernel: _lambda_.11
$region0: #{_lambda_.11}
  #allocation0 [shape = 'u32[]', space=smem, size = 0x4, offset = 0x4, fixed_abs, tag = 'smem constant byte address 0x4 - core index']
  #allocation1 [shape = 'u32[72,128]{1,0:T(1,128)}', space=vmem, size = 0x9000, scoped, tag = 'internal scratch']
  #allocation2 [shape = 'f32[128,128]{1,0:T(8,128)}', space=vmem, size = 0x10000, scoped, tag = 'scratch operand']
  %s0 = inlined_call_operand.vmem [shape: bf16[128,256], index: 0, kind: input, shape index: {}]
  %s1 = inlined_call_operand.vmem [shape: bf16[256,128], index: 1, kind: input, shape index: {}]
  %s2 = inlined_call_operand.vmem [shape: f32[1,128], index: 2, kind: input, shape index: {}]
  %s3 = inlined_call_operand.vmem [shape: f32[128,128], index: 3, kind: output, shape index: {}]
  %s4 = sld [smem:[#allocation0]]
  $region30: #{_lambda_.11} parent=0
    _
  %s6 = ssub.s32 1, %s4
  %s7 = scalar_select 0, %s6, %s4
  // Predicated region
  $region2: #{_lambda_.11} parent=0 // pred_check
    _
  $region3: #{_lambda_.11} parent=0 // pred_check_branch
    %9 = sbr.rel (0) target = $region5
  $region4: #{_lambda_.11} parent=0 // pred_region
    _
  $region5: #{_lambda_.11} parent=0 // pred_fallthru
    _
  // Predicated region
  $region6: #{_lambda_.11} parent=0 // pred_check
    _
  $region7: #{_lambda_.11} parent=0 // pred_check_branch
    %11 = sbr.rel (0) target = $region9
  $region8: #{_lambda_.11} parent=0 // pred_region
    _
  $region9: #{_lambda_.11} parent=0 // pred_fallthru
    _
  // Predicated region
  $region10: #{_lambda_.11} parent=0 // pred_check
    _
  $region11: #{_lambda_.11} parent=0 // pred_check_branch
    %13 = sbr.rel (0) target = $region13
  $region12: #{_lambda_.11} parent=0 // pred_region
    _
  $region13: #{_lambda_.11} parent=0 // pred_fallthru
    _
  %p14 = scmp.eq.s32.totalorder 0, 0
  // Predicated region
  $region14: #{_lambda_.11} parent=0 // pred_check
    %p15 = pneg %p14
  $region15: #{_lambda_.11} parent=0 // pred_check_branch
    %17 = sbr.rel (%p15) target = $region17
  $region16: #{_lambda_.11} parent=0 // pred_region
    %18 = vst [vmem:[#allocation2] sm:$0xff] 0.0
    %19 = vst [vmem:[#allocation2 + $0x8] sm:$0xff] 0.0
    %20 = vst [vmem:[#allocation2 + $0x10] sm:$0xff] 0.0
    %21 = vst [vmem:[#allocation2 + $0x18] sm:$0xff] 0.0
    %22 = vst [vmem:[#allocation2 + $0x20] sm:$0xff] 0.0
    %23 = vst [vmem:[#allocation2 + $0x28] sm:$0xff] 0.0
    %24 = vst [vmem:[#allocation2 + $0x30] sm:$0xff] 0.0
    %25 = vst [vmem:[#allocation2 + $0x38] sm:$0xff] 0.0
    %26 = vst [vmem:[#allocation2 + $0x40] sm:$0xff] 0.0
    %27 = vst [vmem:[#allocation2 + $0x48] sm:$0xff] 0.0
    %28 = vst [vmem:[#allocation2 + $0x50] sm:$0xff] 0.0
    %29 = vst [vmem:[#allocation2 + $0x58] sm:$0xff] 0.0
    %30 = vst [vmem:[#allocation2 + $0x60] sm:$0xff] 0.0
    %31 = vst [vmem:[#allocation2 + $0x68] sm:$0xff] 0.0
    %32 = vst [vmem:[#allocation2 + $0x70] sm:$0xff] 0.0
    %33 = vst [vmem:[#allocation2 + $0x78] sm:$0xff] 0.0
  $region17: #{_lambda_.11} parent=0 // pred_fallthru
    _
  %v34 = vld [vmem:[#allocation2] sm:$0xff]
  %v35 = vld [vmem:[#allocation2 + $0x8] sm:$0xff]
  %v36 = vld [vmem:[#allocation2 + $0x10] sm:$0xff]
  %v37 = vld [vmem:[#allocation2 + $0x18] sm:$0xff]
  %v38 = vld [vmem:[#allocation2 + $0x20] sm:$0xff]
  %v39 = vld [vmem:[#allocation2 + $0x28] sm:$0xff]
  %v40 = vld [vmem:[#allocation2 + $0x30] sm:$0xff]
  %v41 = vld [vmem:[#allocation2 + $0x38] sm:$0xff]
  %v42 = vld [vmem:[#allocation2 + $0x40] sm:$0xff]
  %v43 = vld [vmem:[#allocation2 + $0x48] sm:$0xff]
  %v44 = vld [vmem:[#allocation2 + $0x50] sm:$0xff]
  %v45 = vld [vmem:[#allocation2 + $0x58] sm:$0xff]
  %v46 = vld [vmem:[#allocation2 + $0x60] sm:$0xff]
  %v47 = vld [vmem:[#allocation2 + $0x68] sm:$0xff]
  %v48 = vld [vmem:[#allocation2 + $0x70] sm:$0xff]
  %v49 = vld [vmem:[#allocation2 + $0x78] sm:$0xff]
  %v50 = vld [vmem:[%s0] sm:$0xff]
  %v51 = vld [vmem:[%s0 + $0x8] sm:$0xff]
  %v52 = vld [vmem:[%s0 + $0x10] sm:$0xff]
  %v53 = vld [vmem:[%s0 + $0x18] sm:$0xff]
  %v54 = vld [vmem:[%s0 + $0x20] sm:$0xff]
  %v55 = vld [vmem:[%s0 + $0x28] sm:$0xff]
  %v56 = vld [vmem:[%s0 + $0x30] sm:$0xff]
  %v57 = vld [vmem:[%s0 + $0x38] sm:$0xff]
  %v58 = vld [vmem:[%s0 + $0x40] sm:$0xff]
  %v59 = vld [vmem:[%s0 + $0x48] sm:$0xff]
  %v60 = vld [vmem:[%s0 + $0x50] sm:$0xff]
  %v61 = vld [vmem:[%s0 + $0x58] sm:$0xff]
  %v62 = vld [vmem:[%s0 + $0x60] sm:$0xff]
  %v63 = vld [vmem:[%s0 + $0x68] sm:$0xff]
  %v64 = vld [vmem:[%s0 + $0x70] sm:$0xff]
  %v65 = vld [vmem:[%s0 + $0x78] sm:$0xff]
  %v66 = vld [vmem:[%s1] sm:$0xf]
  %v67 = vld [vmem:[%s1 + $0x4] sm:$0xf]
  %v68 = vld [vmem:[%s1 + $0x8] sm:$0xf]
  %v69 = vld [vmem:[%s1 + $0xc] sm:$0xf]
  %v70 = vld [vmem:[%s1 + $0x10] sm:$0xf]
  %v71 = vld [vmem:[%s1 + $0x14] sm:$0xf]
  %v72 = vld [vmem:[%s1 + $0x18] sm:$0xf]
  %v73 = vld [vmem:[%s1 + $0x1c] sm:$0xf]
  %v74 = vld [vmem:[%s1 + $0x20] sm:$0xf]
  %v75 = vld [vmem:[%s1 + $0x24] sm:$0xf]
  %v76 = vld [vmem:[%s1 + $0x28] sm:$0xf]
  %v77 = vld [vmem:[%s1 + $0x2c] sm:$0xf]
  %v78 = vld [vmem:[%s1 + $0x30] sm:$0xf]
  %v79 = vld [vmem:[%s1 + $0x34] sm:$0xf]
  %v80 = vld [vmem:[%s1 + $0x38] sm:$0xf]
  %v81 = vld [vmem:[%s1 + $0x3c] sm:$0xf]
  %v82 = vld [vmem:[%s1 + $0x40] sm:$0xf]
  %v83 = vld [vmem:[%s1 + $0x44] sm:$0xf]
  %v84 = vld [vmem:[%s1 + $0x48] sm:$0xf]
  %v85 = vld [vmem:[%s1 + $0x4c] sm:$0xf]
  %v86 = vld [vmem:[%s1 + $0x50] sm:$0xf]
  %v87 = vld [vmem:[%s1 + $0x54] sm:$0xf]
  %v88 = vld [vmem:[%s1 + $0x58] sm:$0xf]
  %v89 = vld [vmem:[%s1 + $0x5c] sm:$0xf]
  %v90 = vld [vmem:[%s1 + $0x60] sm:$0xf]
  %v91 = vld [vmem:[%s1 + $0x64] sm:$0xf]
  %v92 = vld [vmem:[%s1 + $0x68] sm:$0xf]
  %v93 = vld [vmem:[%s1 + $0x6c] sm:$0xf]
  %v94 = vld [vmem:[%s1 + $0x70] sm:$0xf]
  %v95 = vld [vmem:[%s1 + $0x74] sm:$0xf]
  %v96 = vld [vmem:[%s1 + $0x78] sm:$0xf]
  %v97 = vld [vmem:[%s1 + $0x7c] sm:$0xf]
  %v114 = vunpack.c.l.b16 %v50
  %v115 = vunpack.c.h.b16 %v50
  %v116 = vunpack.c.l.b16 %v51
  %v117 = vunpack.c.h.b16 %v51
  %v118 = vunpack.c.l.b16 %v52
  %v119 = vunpack.c.h.b16 %v52
  %v120 = vunpack.c.l.b16 %v53
  %v121 = vunpack.c.h.b16 %v53
  %v122 = vunpack.c.l.b16 %v54
  %v123 = vunpack.c.h.b16 %v54
  %v124 = vunpack.c.l.b16 %v55
  %v125 = vunpack.c.h.b16 %v55
  %v126 = vunpack.c.l.b16 %v56
  %v127 = vunpack.c.h.b16 %v56
  %v128 = vunpack.c.l.b16 %v57
  %v129 = vunpack.c.h.b16 %v57
  %v130 = vunpack.c.l.b16 %v58
  %v131 = vunpack.c.h.b16 %v58
  %v132 = vunpack.c.l.b16 %v59
  %v133 = vunpack.c.h.b16 %v59
  %v134 = vunpack.c.l.b16 %v60
  %v135 = vunpack.c.h.b16 %v60
  %v136 = vunpack.c.l.b16 %v61
  %v137 = vunpack.c.h.b16 %v61
  %v138 = vunpack.c.l.b16 %v62
  %v139 = vunpack.c.h.b16 %v62
  %v140 = vunpack.c.l.b16 %v63
  %v141 = vunpack.c.h.b16 %v63
  %v142 = vunpack.c.l.b16 %v64
  %v143 = vunpack.c.h.b16 %v64
  %v144 = vunpack.c.l.b16 %v65
  %v145 = vunpack.c.h.b16 %v65
  %v146 = vpack.c.b16 %v116, %v114
  %v147 = vpack.c.b16 %v117, %v115
  %v148 = vpack.c.b16 %v120, %v118
  %v149 = vpack.c.b16 %v121, %v119
  %v150 = vpack.c.b16 %v124, %v122
  %v151 = vpack.c.b16 %v125, %v123
  %v152 = vpack.c.b16 %v128, %v126
  %v153 = vpack.c.b16 %v129, %v127
  %v154 = vpack.c.b16 %v132, %v130
  %v155 = vpack.c.b16 %v133, %v131
  %v156 = vpack.c.b16 %v136, %v134
  %v157 = vpack.c.b16 %v137, %v135
  %v158 = vpack.c.b16 %v140, %v138
  %v159 = vpack.c.b16 %v141, %v139
  %v160 = vpack.c.b16 %v144, %v142
  %v161 = vpack.c.b16 %v145, %v143
  %v210 = vunpack.c.l.b16 %v66
  %v211 = vunpack.c.l.b16 %v67
  %v212 = vunpack.c.l.b16 %v68
  %v213 = vunpack.c.l.b16 %v69
  %v214 = vunpack.c.l.b16 %v70
  %v215 = vunpack.c.l.b16 %v71
  %v216 = vunpack.c.l.b16 %v72
  %v217 = vunpack.c.l.b16 %v73
  %v218 = vunpack.c.l.b16 %v74
  %v219 = vunpack.c.l.b16 %v75
  %v220 = vunpack.c.l.b16 %v76
  %v221 = vunpack.c.l.b16 %v77
  %v222 = vunpack.c.l.b16 %v78
  %v223 = vunpack.c.l.b16 %v79
  %v224 = vunpack.c.l.b16 %v80
  %v225 = vunpack.c.l.b16 %v81
  %v226 = vunpack.c.l.b16 %v82
  %v227 = vunpack.c.l.b16 %v83
  %v228 = vunpack.c.l.b16 %v84
  %v229 = vunpack.c.l.b16 %v85
  %v230 = vunpack.c.l.b16 %v86
  %v231 = vunpack.c.l.b16 %v87
  %v232 = vunpack.c.l.b16 %v88
  %v233 = vunpack.c.l.b16 %v89
  %v234 = vunpack.c.l.b16 %v90
  %v235 = vunpack.c.l.b16 %v91
  %v236 = vunpack.c.l.b16 %v92
  %v237 = vunpack.c.l.b16 %v93
  %v238 = vunpack.c.l.b16 %v94
  %v239 = vunpack.c.l.b16 %v95
  %v240 = vunpack.c.l.b16 %v96
  %v241 = vunpack.c.l.b16 %v97
  %v242 = vpack.c.b16 %v211, %v210
  %v243 = vpack.c.b16 %v213, %v212
  %v244 = vpack.c.b16 %v215, %v214
  %v245 = vpack.c.b16 %v217, %v216
  %v246 = vpack.c.b16 %v219, %v218
  %v247 = vpack.c.b16 %v221, %v220
  %v248 = vpack.c.b16 %v223, %v222
  %v249 = vpack.c.b16 %v225, %v224
  %v250 = vpack.c.b16 %v227, %v226
  %v251 = vpack.c.b16 %v229, %v228
  %v252 = vpack.c.b16 %v231, %v230
  %v253 = vpack.c.b16 %v233, %v232
  %v254 = vpack.c.b16 %v235, %v234
  %v255 = vpack.c.b16 %v237, %v236
  %v256 = vpack.c.b16 %v239, %v238
  %v257 = vpack.c.b16 %v241, %v240
  %274 = vmatpush.bf16.msra.mxu0 %v249
  %275 = vmatpush.bf16.msra.mxu0 %v248
  %276 = vmatpush.bf16.msra.mxu0 %v247
  %277 = vmatpush.bf16.msra.mxu0 %v246
  %278 = vmatpush.bf16.msra.mxu0 %v245
  %279 = vmatpush.bf16.msra.mxu0 %v244
  %280 = vmatpush.bf16.msra.mxu0 %v243
  %281 = vmatpush.bf16.msra.mxu0 %v242
  %282 = vmatmul.bf16.gmra.mxu0 %v146
  %v283 = vpop.f32.mrf.mxu0
  %v284 = vadd.f32 0.0, %v283
  %v285 = vpop.f32.mrf.mxu0
  %v286 = vadd.f32 0.0, %v285
  %287 = vmatmul.bf16.gmra.mxu0 %v148
  %v288 = vpop.f32.mrf.mxu0
  %v289 = vadd.f32 0.0, %v288
  %v290 = vpop.f32.mrf.mxu0
  %v291 = vadd.f32 0.0, %v290
  %292 = vmatmul.bf16.gmra.mxu0 %v150
  %v293 = vpop.f32.mrf.mxu0
  %v294 = vadd.f32 0.0, %v293
  %v295 = vpop.f32.mrf.mxu0
  %v296 = vadd.f32 0.0, %v295
  %297 = vmatmul.bf16.gmra.mxu0 %v152
  %v298 = vpop.f32.mrf.mxu0
  %v299 = vadd.f32 0.0, %v298
  %v300 = vpop.f32.mrf.mxu0
  %v301 = vadd.f32 0.0, %v300
  %302 = vmatmul.bf16.gmra.mxu0 %v154
  %v303 = vpop.f32.mrf.mxu0
  %v304 = vadd.f32 0.0, %v303
  %v305 = vpop.f32.mrf.mxu0
  %v306 = vadd.f32 0.0, %v305
  %307 = vmatmul.bf16.gmra.mxu0 %v156
  %v308 = vpop.f32.mrf.mxu0
  %v309 = vadd.f32 0.0, %v308
  %v310 = vpop.f32.mrf.mxu0
  %v311 = vadd.f32 0.0, %v310
  %312 = vmatmul.bf16.gmra.mxu0 %v158
  %v313 = vpop.f32.mrf.mxu0
  %v314 = vadd.f32 0.0, %v313
  %v315 = vpop.f32.mrf.mxu0
  %v316 = vadd.f32 0.0, %v315
  %317 = vmatmul.bf16.gmra.mxu0 %v160
  %v318 = vpop.f32.mrf.mxu0
  %v319 = vadd.f32 0.0, %v318
  %v320 = vpop.f32.mrf.mxu0
  %v321 = vadd.f32 0.0, %v320
  %322 = vdwg.mxu0
  %323 = vmatpush.bf16.msra.mxu0 %v257
  %324 = vmatpush.bf16.msra.mxu0 %v256
  %325 = vmatpush.bf16.msra.mxu0 %v255
  %326 = vmatpush.bf16.msra.mxu0 %v254
  %327 = vmatpush.bf16.msra.mxu0 %v253
  %328 = vmatpush.bf16.msra.mxu0 %v252
  %329 = vmatpush.bf16.msra.mxu0 %v251
  %330 = vmatpush.bf16.msra.mxu0 %v250
  %331 = vmatmul.bf16.gmra.mxu0 %v147
  %v332 = vpop.f32.mrf.mxu0
  %v333 = vadd.f32 %v284, %v332
  %v334 = vpop.f32.mrf.mxu0
  %v335 = vadd.f32 %v286, %v334
  %336 = vmatmul.bf16.gmra.mxu0 %v149
  %v337 = vpop.f32.mrf.mxu0
  %v338 = vadd.f32 %v289, %v337
  %v339 = vpop.f32.mrf.mxu0
  %v340 = vadd.f32 %v291, %v339
  %341 = vmatmul.bf16.gmra.mxu0 %v151
  %v342 = vpop.f32.mrf.mxu0
  %v343 = vadd.f32 %v294, %v342
  %v344 = vpop.f32.mrf.mxu0
  %v345 = vadd.f32 %v296, %v344
  %346 = vmatmul.bf16.gmra.mxu0 %v153
  %v347 = vpop.f32.mrf.mxu0
  %v348 = vadd.f32 %v299, %v347
  %v349 = vpop.f32.mrf.mxu0
  %v350 = vadd.f32 %v301, %v349
  %351 = vmatmul.bf16.gmra.mxu0 %v155
  %v352 = vpop.f32.mrf.mxu0
  %v353 = vadd.f32 %v304, %v352
  %v354 = vpop.f32.mrf.mxu0
  %v355 = vadd.f32 %v306, %v354
  %356 = vmatmul.bf16.gmra.mxu0 %v157
  %v357 = vpop.f32.mrf.mxu0
  %v358 = vadd.f32 %v309, %v357
  %v359 = vpop.f32.mrf.mxu0
  %v360 = vadd.f32 %v311, %v359
  %361 = vmatmul.bf16.gmra.mxu0 %v159
  %v362 = vpop.f32.mrf.mxu0
  %v363 = vadd.f32 %v314, %v362
  %v364 = vpop.f32.mrf.mxu0
  %v365 = vadd.f32 %v316, %v364
  %366 = vmatmul.bf16.gmra.mxu0 %v161
  %v367 = vpop.f32.mrf.mxu0
  %v368 = vadd.f32 %v319, %v367
  %v369 = vpop.f32.mrf.mxu0
  %v370 = vadd.f32 %v321, %v369
  %371 = vdwg.mxu0
  %v372 = vadd.f32 %v34, %v333
  %v373 = vadd.f32 %v35, %v335
  %v374 = vadd.f32 %v36, %v338
  %v375 = vadd.f32 %v37, %v340
  %v376 = vadd.f32 %v38, %v343
  %v377 = vadd.f32 %v39, %v345
  %v378 = vadd.f32 %v40, %v348
  %v379 = vadd.f32 %v41, %v350
  %v380 = vadd.f32 %v42, %v353
  %v381 = vadd.f32 %v43, %v355
  %v382 = vadd.f32 %v44, %v358
  %v383 = vadd.f32 %v45, %v360
  %v384 = vadd.f32 %v46, %v363
  %v385 = vadd.f32 %v47, %v365
  %v386 = vadd.f32 %v48, %v368
  %v387 = vadd.f32 %v49, %v370
  %388 = vst [vmem:[#allocation2] sm:$0xff] %v372
  %389 = vst [vmem:[#allocation2 + $0x8] sm:$0xff] %v373
  %390 = vst [vmem:[#allocation2 + $0x10] sm:$0xff] %v374
  %391 = vst [vmem:[#allocation2 + $0x18] sm:$0xff] %v375
  %392 = vst [vmem:[#allocation2 + $0x20] sm:$0xff] %v376
  %393 = vst [vmem:[#allocation2 + $0x28] sm:$0xff] %v377
  %394 = vst [vmem:[#allocation2 + $0x30] sm:$0xff] %v378
  %395 = vst [vmem:[#allocation2 + $0x38] sm:$0xff] %v379
  %396 = vst [vmem:[#allocation2 + $0x40] sm:$0xff] %v380
  %397 = vst [vmem:[#allocation2 + $0x48] sm:$0xff] %v381
  %398 = vst [vmem:[#allocation2 + $0x50] sm:$0xff] %v382
  %399 = vst [vmem:[#allocation2 + $0x58] sm:$0xff] %v383
  %400 = vst [vmem:[#allocation2 + $0x60] sm:$0xff] %v384
  %401 = vst [vmem:[#allocation2 + $0x68] sm:$0xff] %v385
  %402 = vst [vmem:[#allocation2 + $0x70] sm:$0xff] %v386
  %403 = vst [vmem:[#allocation2 + $0x78] sm:$0xff] %v387
  // Predicated region
  $region18: #{_lambda_.11} parent=0 // pred_check
    %p404 = pneg %p14
  $region19: #{_lambda_.11} parent=0 // pred_check_branch
    %406 = sbr.rel (%p404) target = $region21
  $region20: #{_lambda_.11} parent=0 // pred_region
    %v407 = vld [vmem:[#allocation2] sm:$0xff]
    %v408 = vld [vmem:[#allocation2 + $0x8] sm:$0xff]
    %v409 = vld [vmem:[#allocation2 + $0x10] sm:$0xff]
    %v410 = vld [vmem:[#allocation2 + $0x18] sm:$0xff]
    %v411 = vld [vmem:[#allocation2 + $0x20] sm:$0xff]
    %v412 = vld [vmem:[#allocation2 + $0x28] sm:$0xff]
    %v413 = vld [vmem:[#allocation2 + $0x30] sm:$0xff]
    %v414 = vld [vmem:[#allocation2 + $0x38] sm:$0xff]
    %v415 = vld [vmem:[#allocation2 + $0x40] sm:$0xff]
    %v416 = vld [vmem:[#allocation2 + $0x48] sm:$0xff]
    %v417 = vld [vmem:[#allocation2 + $0x50] sm:$0xff]
    %v418 = vld [vmem:[#allocation2 + $0x58] sm:$0xff]
    %v419 = vld [vmem:[#allocation2 + $0x60] sm:$0xff]
    %v420 = vld [vmem:[#allocation2 + $0x68] sm:$0xff]
    %v421 = vld [vmem:[#allocation2 + $0x70] sm:$0xff]
    %v422 = vld [vmem:[#allocation2 + $0x78] sm:$0xff]
    %v423 = vld [vmem:[%s2] sm:$0x1]
    %v425 = vperm.slane %v423, 0
    %v427 = vadd.f32 %v407, %v425
    %v428 = vadd.f32 %v408, %v425
    %v429 = vadd.f32 %v409, %v425
    %v430 = vadd.f32 %v410, %v425
    %v431 = vadd.f32 %v411, %v425
    %v432 = vadd.f32 %v412, %v425
    %v433 = vadd.f32 %v413, %v425
    %v434 = vadd.f32 %v414, %v425
    %v435 = vadd.f32 %v415, %v425
    %v436 = vadd.f32 %v416, %v425
    %v437 = vadd.f32 %v417, %v425
    %v438 = vadd.f32 %v418, %v425
    %v439 = vadd.f32 %v419, %v425
    %v440 = vadd.f32 %v420, %v425
    %v441 = vadd.f32 %v421, %v425
    %v442 = vadd.f32 %v422, %v425
    %v443 = vtanh.pop %v427
    %v444 = vtanh.pop %v428
    %v445 = vtanh.pop %v429
    %v446 = vtanh.pop %v430
    %v447 = vtanh.pop %v431
    %v448 = vtanh.pop %v432
    %v449 = vtanh.pop %v433
    %v450 = vtanh.pop %v434
    %v451 = vtanh.pop %v435
    %v452 = vtanh.pop %v436
    %v453 = vtanh.pop %v437
    %v454 = vtanh.pop %v438
    %v455 = vtanh.pop %v439
    %v456 = vtanh.pop %v440
    %v457 = vtanh.pop %v441
    %v458 = vtanh.pop %v442
    %459 = vst [vmem:[%s3] sm:$0xff] %v443
    %460 = vst [vmem:[%s3 + $0x8] sm:$0xff] %v444
    %461 = vst [vmem:[%s3 + $0x10] sm:$0xff] %v445
    %462 = vst [vmem:[%s3 + $0x18] sm:$0xff] %v446
    %463 = vst [vmem:[%s3 + $0x20] sm:$0xff] %v447
    %464 = vst [vmem:[%s3 + $0x28] sm:$0xff] %v448
    %465 = vst [vmem:[%s3 + $0x30] sm:$0xff] %v449
    %466 = vst [vmem:[%s3 + $0x38] sm:$0xff] %v450
    %467 = vst [vmem:[%s3 + $0x40] sm:$0xff] %v451
    %468 = vst [vmem:[%s3 + $0x48] sm:$0xff] %v452
    %469 = vst [vmem:[%s3 + $0x50] sm:$0xff] %v453
    %470 = vst [vmem:[%s3 + $0x58] sm:$0xff] %v454
    %471 = vst [vmem:[%s3 + $0x60] sm:$0xff] %v455
    %472 = vst [vmem:[%s3 + $0x68] sm:$0xff] %v456
    %473 = vst [vmem:[%s3 + $0x70] sm:$0xff] %v457
    %474 = vst [vmem:[%s3 + $0x78] sm:$0xff] %v458
  $region21: #{_lambda_.11} parent=0 // pred_fallthru
    _
  // Predicated region
  $region22: #{_lambda_.11} parent=0 // pred_check
    _
  $region23: #{_lambda_.11} parent=0 // pred_check_branch
    %476 = sbr.rel (0) target = $region25
  $region24: #{_lambda_.11} parent=0 // pred_region
    _
  $region25: #{_lambda_.11} parent=0 // pred_fallthru
    _
  // Predicated region
  $region26: #{_lambda_.11} parent=0 // pred_check
    _
  $region27: #{_lambda_.11} parent=0 // pred_check_branch
    %478 = sbr.rel (0) target = $region29
  $region28: #{_lambda_.11} parent=0 // pred_region
    _
  $region29: #{_lambda_.11} parent=0 // pred_fallthru
    _

</llo_original>
